<compile_context>
chip_gen: v6e
topology: v6e:2x2x1
jax: 0.10.0
libtpu: 0.0.40
codegen_flags: <defaults>
</compile_context>

<pallas_src>
import math
import jax
import jax.numpy as jnp
from jax.experimental import pallas as pl
from jax.experimental.pallas import tpu as pltpu

NODE_DIM = 8       # node_dim D  -> edge encoder output is D*D = 64
EDGE_DIM = 6       # raw edge feature dim
HIDDEN = 32        # hidden layer of the edge encoder MLP
NUM_NODES = 16     # nodes per graph
NUM_EDGES = 32     # edges per graph
NUM_GRAPHS = 16    # graphs batched per pallas_call: NUM_GRAPHS * NODE_DIM = 128 -> lane-dense output

assert NODE_DIM & (NODE_DIM - 1) == 0, "NODE_DIM must be a power of two"
assert NUM_EDGES & (NUM_EDGES - 1) == 0, "NUM_EDGES must be a power of two (graph id = edge row >> log2(E))"
assert (NUM_GRAPHS * NODE_DIM) % 128 == 0, "output must be lane-dense (multiple of 128 lanes)"

LOG2_D = NODE_DIM.bit_length() - 1
LOG2_E = NUM_EDGES.bit_length() - 1
BN_ = NUM_GRAPHS * NUM_NODES    # 256 total nodes
BE_ = NUM_GRAPHS * NUM_EDGES    # 512 total edges
BD_ = NUM_GRAPHS * NODE_DIM     # 128 output lanes

# ---- packed input slab layout (f32, [SLAB_ROWS, SLAB_COLS], one DMA) ----
ROW_EDGE = 0                    # rows 0..7  : edge features^T (6 rows) + ones row + zero row
ROW_SRC = 8                     # row 8      : global source node index per edge (exact small ints as f32)
ROW_DST = 9                     # row 9      : local dest node index per edge (as f32)
ROW_BIAS = 10                   # row 10     : output bias, pre-tiled to [1, B*D]
ROW_NODE = 16                   # rows 16..23: node states^T [D, B*N]
ROW_W = 24                      # rows 24..87: w1aug^T [D*D, H+1] at lanes 0..32, w0aug^T [H+1, 8] at lanes 128..135
W0_LANE = 128
SLAB_ROWS = ROW_W + NODE_DIM * NODE_DIM          # 88
SLAB_COLS = BE_                                  # 512
assert SLAB_COLS >= max(BN_, BD_, W0_LANE + 8)


def message_passing_kernel(slab_ref, out_ref):
    D, D2, H, N = NODE_DIM, NODE_DIM * NODE_DIM, HIDDEN, NUM_NODES
    BE, BN, BD = BE_, BN_, BD_
    f32 = jnp.float32

    # ---------------- unpack the single input slab (static slices; lane offsets 0 or 128) ----
    edge_aug = slab_ref[ROW_EDGE:ROW_EDGE + 8, :]                   # [8, BE]   6 feature rows + ones + zeros
    src_row = slab_ref[ROW_SRC:ROW_SRC + 1, :]                      # [1, BE]   global src node id (f32)
    dst_row = slab_ref[ROW_DST:ROW_DST + 1, :]                      # [1, BE]   local dst node id (f32)
    bias_t = slab_ref[ROW_BIAS:ROW_BIAS + 1, 0:BD]                  # [1, BD]   bias pre-tiled per graph block
    node_t = slab_ref[ROW_NODE:ROW_NODE + D, 0:BN]                  # [D, BN]   node states, transposed
    w0aug = slab_ref[ROW_W:ROW_W + H + 1, W0_LANE:W0_LANE + 8]      # [H+1, 8]  layer-0 weights (BN+bias folded)
    w1aug = slab_ref[ROW_W:ROW_W + D2, 0:H + 1]                     # [D2, H+1] layer-1 weights (BN+bias folded)

    # ---------------- edge encoder, feature-major (the ones row carries both folded biases) ----
    h_aug = jnp.maximum(jnp.dot(w0aug, edge_aug, preferred_element_type=f32), 0.0)    # [H+1, BE]
    enc_t = jnp.maximum(jnp.dot(w1aug, h_aug, preferred_element_type=f32), 0.0)       # [D2,  BE]

    # ---------------- gather source node states (review: gather first, then expand) ----
    src_i = src_row.astype(jnp.int32)
    m_iota = jax.lax.broadcasted_iota(jnp.int32, (BN, BE), 0)
    onehot_src_t = (src_i == m_iota).astype(f32)                                       # [BN, BE]
    x_i_t = jnp.dot(node_t, onehot_src_t, preferred_element_type=f32)                  # [D,  BE]

    # ---------------- per-edge vec-mat via iota-built 0/1 selection matrices ----
    rt_r = jax.lax.broadcasted_iota(jnp.int32, (D2, D), 0)
    rt_c = jax.lax.broadcasted_iota(jnp.int32, (D2, D), 1)
    r_t = ((rt_r >> LOG2_D) == rt_c).astype(f32)                     # [D2, D] repeat feature i across its D-group
    x_rep_t = jnp.dot(r_t, x_i_t, preferred_element_type=f32)        # [D2, BE]

    st_r = jax.lax.broadcasted_iota(jnp.int32, (D, D2), 0)
    st_c = jax.lax.broadcasted_iota(jnp.int32, (D, D2), 1)
    s_t = ((st_c & (D - 1)) == st_r).astype(f32)                     # [D, D2] fold the D-groups back
    msg_t = jnp.dot(s_t, x_rep_t * enc_t, preferred_element_type=f32)  # [D, BE]  msg_t[j, e] = message[e, j]

    # ---------------- scatter-mean into the packed lane-dense [N, B*D] output ----
    tt_r = jax.lax.broadcasted_iota(jnp.int32, (BD, D), 0)
    tt_c = jax.lax.broadcasted_iota(jnp.int32, (BD, D), 1)
    tile_t = ((tt_r & (D - 1)) == tt_c).astype(f32)                   # [BD, D] tile message across graph blocks
    msg_tiled_t = jnp.dot(tile_t, msg_t, preferred_element_type=f32)  # [BD, BE]

    mk_r = jax.lax.broadcasted_iota(jnp.int32, (BD, BE), 0)
    mk_c = jax.lax.broadcasted_iota(jnp.int32, (BD, BE), 1)
    mask_t = ((mk_r >> LOG2_D) == (mk_c >> LOG2_E)).astype(f32)       # [BD, BE] edge e belongs to this graph block

    dst_i = dst_row.astype(jnp.int32)
    n_iota = jax.lax.broadcasted_iota(jnp.int32, (N, BE), 0)
    onehot_dst_t = (dst_i == n_iota).astype(f32)                      # [N, BE]

    summed = jnp.einsum("ne,ce->nc", onehot_dst_t, msg_tiled_t * mask_t,
                        preferred_element_type=f32)                   # [N, BD]
    counts = jnp.einsum("ne,ce->nc", onehot_dst_t, mask_t,
                        preferred_element_type=f32)                   # [N, BD] per-graph in-degree (mask reused)
    inv = pl.reciprocal(jnp.maximum(counts, 1.0), approx=False)

    out_ref[...] = jnp.maximum(summed * inv + bias_t, 0.0)


def message_passing_forward(slab):
    return pl.pallas_call(
        message_passing_kernel,
        out_shape=jax.ShapeDtypeStruct((NUM_NODES, BD_), jnp.float32),
        in_specs=[pl.BlockSpec(memory_space=pltpu.MemorySpace.VMEM)],
        out_specs=pl.BlockSpec(memory_space=pltpu.MemorySpace.VMEM),
    )(slab)


def make_params(key):
    """Deterministic parameter init (shapes follow the PyTorch module __init__)."""
    ks = jax.random.split(key, 11)
    eps = 1e-5

    def linear_bn(kw, kg, kb, km, kv, fan_in, fan_out):
        bound = 1.0 / math.sqrt(fan_in)
        w = jax.random.uniform(kw, (fan_out, fan_in), jnp.float32, -bound, bound)  # torch Linear layout
        gamma = jax.random.uniform(kg, (fan_out,), jnp.float32, 0.5, 1.5)
        beta = jax.random.uniform(kb, (fan_out,), jnp.float32, -0.1, 0.1)
        rmean = jax.random.uniform(km, (fan_out,), jnp.float32, -0.1, 0.1)
        rvar = jax.random.uniform(kv, (fan_out,), jnp.float32, 0.5, 1.5)
        scale = gamma / jnp.sqrt(rvar + eps)
        shift = beta - rmean * scale
        return w.T, scale.reshape(1, -1), shift.reshape(1, -1)

    w0t, s0, b0 = linear_bn(ks[0], ks[1], ks[2], ks[3], ks[4], EDGE_DIM, HIDDEN)
    w1t, s1, b1 = linear_bn(ks[5], ks[6], ks[7], ks[8], ks[9], HIDDEN, NODE_DIM * NODE_DIM)
    bnd = 1.0 / math.sqrt(NODE_DIM)
    bias = jax.random.uniform(ks[10], (1, NODE_DIM), jnp.float32, -bnd, bnd)
    return {"w0t": w0t, "s0": s0, "b0": b0, "w1t": w1t, "s1": s1, "b1": b1, "bias": bias}


def pack_inputs(node_states, edge_feat, src, dst, p):
    """Fold eval-mode BN + linear biases into augmented transposed weights and pack every kernel
    input into ONE lane-dense f32 slab (single DMA).  Indices are exact small ints stored as f32."""
    D, D2, H = NODE_DIM, NODE_DIM * NODE_DIM, HIDDEN
    w0f = p["w0t"] * p["s0"]                      # [EDGE_DIM, H]   BN scale folded in
    w1f = p["w1t"] * p["s1"]                      # [H, D*D]

    # layer-0 augmented weights: column EDGE_DIM multiplies the ones row (carries b0); the extra
    # output row H emits a constant 1 that carries b1 through layer 1.
    w0aug_t = jnp.zeros((H + 1, 8), jnp.float32)
    w0aug_t = w0aug_t.at[:H, :EDGE_DIM].set(w0f.T)
    w0aug_t = w0aug_t.at[:H, EDGE_DIM].set(p["b0"][0])
    w0aug_t = w0aug_t.at[H, EDGE_DIM].set(1.0)
    w1aug_t = jnp.zeros((D2, H + 1), jnp.float32)
    w1aug_t = w1aug_t.at[:, :H].set(w1f.T)
    w1aug_t = w1aug_t.at[:, H].set(p["b1"][0])

    slab = jnp.zeros((SLAB_ROWS, SLAB_COLS), jnp.float32)
    slab = slab.at[0:EDGE_DIM, :].set(edge_feat.T)
    slab = slab.at[EDGE_DIM, :].set(1.0)                                        # ones row
    slab = slab.at[ROW_SRC, :].set(src.astype(jnp.float32))                     # global src ids (< 2^24 -> exact)
    slab = slab.at[ROW_DST, :].set((dst % NUM_NODES).astype(jnp.float32))       # local dst ids
    slab = slab.at[ROW_BIAS, 0:BD_].set(jnp.tile(p["bias"][0], NUM_GRAPHS))     # bias pre-tiled to [1, B*D]
    slab = slab.at[ROW_NODE:ROW_NODE + D, 0:BN_].set(node_states.T)
    slab = slab.at[ROW_W:ROW_W + H + 1, W0_LANE:W0_LANE + 8].set(w0aug_t)
    slab = slab.at[ROW_W:ROW_W + D2, 0:H + 1].set(w1aug_t)
    return slab


def reference_forward(node_states, edge_index, edge, p):
    """Pure-JAX reference mirroring the PyTorch forward (eval-mode BN, unfolded params)."""
    hp = jax.lax.Precision.HIGHEST
    h = jnp.maximum(jnp.dot(edge, p["w0t"], precision=hp) * p["s0"] + p["b0"], 0.0)
    enc = jnp.maximum(jnp.dot(h, p["w1t"], precision=hp) * p["s1"] + p["b1"], 0.0)
    a_in = enc.reshape(-1, NODE_DIM, NODE_DIM)
    src, dst = edge_index[:, 0], edge_index[:, 1]
    x_i = node_states[src]
    msg = jnp.einsum("ed,edf->ef", x_i, a_in, precision=hp)
    num_nodes = node_states.shape[0]
    summed = jax.ops.segment_sum(msg, dst, num_segments=num_nodes)
    counts = jax.ops.segment_sum(jnp.ones((edge.shape[0],), jnp.float32), dst, num_segments=num_nodes)
    mean = summed / jnp.maximum(counts, 1.0)[:, None]
    return jnp.maximum(mean + p["bias"], 0.0)


if __name__ == "__main__":
    B, N, E, D = NUM_GRAPHS, NUM_NODES, NUM_EDGES, NODE_DIM
    key = jax.random.PRNGKey(0)
    k_node, k_edge, k_src, k_dst, k_par = jax.random.split(key, 5)

    node_states = jax.random.normal(k_node, (B * N, D), jnp.float32)
    edge_feat = jax.random.normal(k_edge, (B * E, EDGE_DIM), jnp.float32)

    # Batched graphs (PyG-style): graph b owns nodes [b*N, (b+1)*N) and edges [b*E, (b+1)*E),
    # with global node indices -- exactly the layout the PyTorch module consumes.
    graph_off = (jnp.arange(B, dtype=jnp.int32) * N)[:, None]
    src = (jax.random.randint(k_src, (B, E), 0, N, jnp.int32) + graph_off).reshape(B * E)
    dst = (jax.random.randint(k_dst, (B, E), 0, N, jnp.int32) + graph_off).reshape(B * E)
    edge_index = jnp.stack([src, dst], axis=1)                      # [B*E, 2] (reference layout)

    params = make_params(k_par)
    slab = pack_inputs(node_states, edge_feat, src, dst, params)    # single [88, 512] f32 input

    out = message_passing_forward(slab)                             # [N, B*D] packed output
    out = jax.block_until_ready(out)

    ref = reference_forward(node_states, edge_index, edge_feat, params)          # [B*N, D]
    ref_packed = ref.reshape(B, N, D).transpose(1, 0, 2).reshape(N, B * D)       # -> [N, B*D]

    assert out.shape == (N, B * D)
    assert jnp.allclose(out, ref_packed, atol=1e-4, rtol=1e-4), "Pallas kernel mismatch vs reference"
    print("KERNEL_OK")
</pallas_src>

<mosaic_0001>
module attributes {stable_mosaic.version = 11 : i64} {
  func.func @message_passing_kernel(%arg0: memref<88x512xf32, #tpu.memory_space<vmem>>, %arg1: memref<16x128xf32, #tpu.memory_space<vmem>>) attributes {dimension_semantics = [], scalar_prefetch = 0 : i64, scratch_operands = 0 : i64, tpu.core_type = #tpu.core_type<tc>} {
    %c0 = arith.constant 0 : index
    %c0_0 = arith.constant 0 : index
    %0 = vector.load %arg0[%c0, %c0_0] : memref<88x512xf32, #tpu.memory_space<vmem>>, vector<8x512xf32>
    %c8 = arith.constant 8 : index
    %c0_1 = arith.constant 0 : index
    %1 = vector.load %arg0[%c8, %c0_1] : memref<88x512xf32, #tpu.memory_space<vmem>>, vector<1x512xf32>
    %c9 = arith.constant 9 : index
    %c0_2 = arith.constant 0 : index
    %2 = vector.load %arg0[%c9, %c0_2] : memref<88x512xf32, #tpu.memory_space<vmem>>, vector<1x512xf32>
    %c10 = arith.constant 10 : index
    %c0_3 = arith.constant 0 : index
    %3 = vector.load %arg0[%c10, %c0_3] : memref<88x512xf32, #tpu.memory_space<vmem>>, vector<1x128xf32>
    %c16 = arith.constant 16 : index
    %c0_4 = arith.constant 0 : index
    %4 = vector.load %arg0[%c16, %c0_4] : memref<88x512xf32, #tpu.memory_space<vmem>>, vector<8x256xf32>
    %c24 = arith.constant 24 : index
    %c128 = arith.constant 128 : index
    %5 = vector.load %arg0[%c24, %c128] : memref<88x512xf32, #tpu.memory_space<vmem>>, vector<33x8xf32>
    %c24_5 = arith.constant 24 : index
    %c0_6 = arith.constant 0 : index
    %6 = vector.load %arg0[%c24_5, %c0_6] : memref<88x512xf32, #tpu.memory_space<vmem>>, vector<64x33xf32>
    %cst = arith.constant dense<0.000000e+00> : vector<33x512xf32>
    %7 = tpu.matmul %5, %0, %cst {dimension_numbers = #tpu.dot_dimension_numbers<[1], [0], [0], [1], [0, 0, 1, 1], [], []>} : vector<33x8xf32>, vector<8x512xf32>, vector<33x512xf32> -> vector<33x512xf32>
    %cst_7 = arith.constant 0.000000e+00 : f32
    %8 = vector.broadcast %cst_7 : f32 to vector<33x512xf32>
    %9 = arith.maximumf %7, %8 : vector<33x512xf32>
    %cst_8 = arith.constant dense<0.000000e+00> : vector<64x512xf32>
    %10 = tpu.matmul %6, %9, %cst_8 {dimension_numbers = #tpu.dot_dimension_numbers<[1], [0], [0], [1], [0, 0, 1, 1], [], []>} : vector<64x33xf32>, vector<33x512xf32>, vector<64x512xf32> -> vector<64x512xf32>
    %cst_9 = arith.constant 0.000000e+00 : f32
    %11 = vector.broadcast %cst_9 : f32 to vector<64x512xf32>
    %12 = arith.maximumf %10, %11 : vector<64x512xf32>
    %13 = arith.fptosi %1 : vector<1x512xf32> to vector<1x512xi32>
    %14 = tpu.iota {dimensions = array<i32: 0>} : vector<256x512xi32>
    %15 = vector.broadcast %13 : vector<1x512xi32> to vector<256x512xi32>
    %16 = arith.cmpi eq, %15, %14 : vector<256x512xi32>
    %17 = arith.extui %16 : vector<256x512xi1> to vector<256x512xi32>
    %18 = arith.sitofp %17 : vector<256x512xi32> to vector<256x512xf32>
    %cst_10 = arith.constant dense<0.000000e+00> : vector<8x512xf32>
    %19 = tpu.matmul %4, %18, %cst_10 {dimension_numbers = #tpu.dot_dimension_numbers<[1], [0], [0], [1], [0, 0, 1, 1], [], []>} : vector<8x256xf32>, vector<256x512xf32>, vector<8x512xf32> -> vector<8x512xf32>
    %20 = tpu.iota {dimensions = array<i32: 0>} : vector<64x8xi32>
    %21 = tpu.iota {dimensions = array<i32: 1>} : vector<64x8xi32>
    %c3_i32 = arith.constant 3 : i32
    %22 = vector.broadcast %c3_i32 : i32 to vector<64x8xi32>
    %23 = arith.shrsi %20, %22 : vector<64x8xi32>
    %24 = arith.cmpi eq, %23, %21 : vector<64x8xi32>
    %25 = arith.extui %24 : vector<64x8xi1> to vector<64x8xi32>
    %26 = arith.sitofp %25 : vector<64x8xi32> to vector<64x8xf32>
    %cst_11 = arith.constant dense<0.000000e+00> : vector<64x512xf32>
    %27 = tpu.matmul %26, %19, %cst_11 {dimension_numbers = #tpu.dot_dimension_numbers<[1], [0], [0], [1], [0, 0, 1, 1], [], []>} : vector<64x8xf32>, vector<8x512xf32>, vector<64x512xf32> -> vector<64x512xf32>
    %28 = tpu.iota {dimensions = array<i32: 0>} : vector<8x64xi32>
    %29 = tpu.iota {dimensions = array<i32: 1>} : vector<8x64xi32>
    %c7_i32 = arith.constant 7 : i32
    %30 = vector.broadcast %c7_i32 : i32 to vector<8x64xi32>
    %31 = arith.andi %29, %30 : vector<8x64xi32>
    %32 = arith.cmpi eq, %31, %28 : vector<8x64xi32>
    %33 = arith.extui %32 : vector<8x64xi1> to vector<8x64xi32>
    %34 = arith.sitofp %33 : vector<8x64xi32> to vector<8x64xf32>
    %35 = arith.mulf %27, %12 : vector<64x512xf32>
    %cst_12 = arith.constant dense<0.000000e+00> : vector<8x512xf32>
    %36 = tpu.matmul %34, %35, %cst_12 {dimension_numbers = #tpu.dot_dimension_numbers<[1], [0], [0], [1], [0, 0, 1, 1], [], []>} : vector<8x64xf32>, vector<64x512xf32>, vector<8x512xf32> -> vector<8x512xf32>
    %37 = tpu.iota {dimensions = array<i32: 0>} : vector<128x8xi32>
    %38 = tpu.iota {dimensions = array<i32: 1>} : vector<128x8xi32>
    %c7_i32_13 = arith.constant 7 : i32
    %39 = vector.broadcast %c7_i32_13 : i32 to vector<128x8xi32>
    %40 = arith.andi %37, %39 : vector<128x8xi32>
    %41 = arith.cmpi eq, %40, %38 : vector<128x8xi32>
    %42 = arith.extui %41 : vector<128x8xi1> to vector<128x8xi32>
    %43 = arith.sitofp %42 : vector<128x8xi32> to vector<128x8xf32>
    %cst_14 = arith.constant dense<0.000000e+00> : vector<128x512xf32>
    %44 = tpu.matmul %43, %36, %cst_14 {dimension_numbers = #tpu.dot_dimension_numbers<[1], [0], [0], [1], [0, 0, 1, 1], [], []>} : vector<128x8xf32>, vector<8x512xf32>, vector<128x512xf32> -> vector<128x512xf32>
    %45 = tpu.iota {dimensions = array<i32: 0>} : vector<128x512xi32>
    %46 = tpu.iota {dimensions = array<i32: 1>} : vector<128x512xi32>
    %c3_i32_15 = arith.constant 3 : i32
    %47 = vector.broadcast %c3_i32_15 : i32 to vector<128x512xi32>
    %48 = arith.shrsi %45, %47 : vector<128x512xi32>
    %c5_i32 = arith.constant 5 : i32
    %49 = vector.broadcast %c5_i32 : i32 to vector<128x512xi32>
    %50 = arith.shrsi %46, %49 : vector<128x512xi32>
    %51 = arith.cmpi eq, %48, %50 : vector<128x512xi32>
    %52 = arith.extui %51 : vector<128x512xi1> to vector<128x512xi32>
    %53 = arith.sitofp %52 : vector<128x512xi32> to vector<128x512xf32>
    %54 = arith.fptosi %2 : vector<1x512xf32> to vector<1x512xi32>
    %55 = tpu.iota {dimensions = array<i32: 0>} : vector<16x512xi32>
    %56 = vector.broadcast %54 : vector<1x512xi32> to vector<16x512xi32>
    %57 = arith.cmpi eq, %56, %55 : vector<16x512xi32>
    %58 = arith.extui %57 : vector<16x512xi1> to vector<16x512xi32>
    %59 = arith.sitofp %58 : vector<16x512xi32> to vector<16x512xf32>
    %60 = arith.mulf %44, %53 : vector<128x512xf32>
    "tpu.trace_start"() <{level = 10 : i32, message = "ne,ce->nc"}> : () -> ()
    %cst_16 = arith.constant dense<0.000000e+00> : vector<16x128xf32>
    %61 = tpu.matmul %59, %60, %cst_16 {dimension_numbers = #tpu.dot_dimension_numbers<[1], [1], [0], [0], [0, 0, 1, 0], [], []>} : vector<16x512xf32>, vector<128x512xf32>, vector<16x128xf32> -> vector<16x128xf32>
    %cst_17 = arith.constant dense<0.000000e+00> : vector<16x128xf32>
    %62 = tpu.matmul %59, %53, %cst_17 {dimension_numbers = #tpu.dot_dimension_numbers<[1], [1], [0], [0], [0, 0, 1, 0], [], []>} : vector<16x512xf32>, vector<128x512xf32>, vector<16x128xf32> -> vector<16x128xf32>
    "tpu.trace_stop"() : () -> ()
    %cst_18 = arith.constant 1.000000e+00 : f32
    %63 = vector.broadcast %cst_18 : f32 to vector<16x128xf32>
    %64 = arith.maximumf %62, %63 : vector<16x128xf32>
    %65 = tpu.reciprocal %64 : vector<16x128xf32> -> vector<16x128xf32>
    %66 = arith.mulf %61, %65 : vector<16x128xf32>
    %67 = vector.broadcast %3 : vector<1x128xf32> to vector<16x128xf32>
    %68 = arith.addf %66, %67 : vector<16x128xf32>
    %cst_19 = arith.constant 0.000000e+00 : f32
    %69 = vector.broadcast %cst_19 : f32 to vector<16x128xf32>
    %70 = arith.maximumf %68, %69 : vector<16x128xf32>
    %c0_20 = arith.constant 0 : index
    %c0_21 = arith.constant 0 : index
    %71 = vector.load %arg1[%c0_20, %c0_21] : memref<16x128xf32, #tpu.memory_space<vmem>>, vector<16x128xf32>
    tpu.vector_store %arg1[%c0_20, %c0_21], %70 {strides = array<i32>} : memref<16x128xf32, #tpu.memory_space<vmem>>, vector<16x128xf32>,
    return
  }
}

</mosaic_0001>

<llo_original>
// kernel: tpu_custom_call.1
$region0: #{tpu_custom_call.1}
  #allocation0 [shape = 'u32[]', space=smem, size = 0x4, offset = 0x4, fixed_abs, tag = 'smem constant byte address 0x4 - core index']
  #allocation1 [shape = 'u32[144,128]{1,0:T(1,128)}', space=vmem, size = 0x12000, scoped, tag = 'internal scratch']
  %s0 = inlined_call_operand.hbm [shape: f32[88,512], index: 0, kind: input, shape index: {}]
  %s1 = inlined_call_operand.hbm [shape: f32[16,128], index: 1, kind: output, shape index: {}]
  %s2 = sld [smem:[#allocation0]]
  $region18: #{tpu_custom_call.1} parent=0
    _
  %s4 = ssub.s32 1, %s2
  %s5 = scalar_select 0, %s4, %s2
  $region1: #{tpu_custom_call.1} parent=0
    #allocation2 [shape = 'u8[180224]{0}', space=vmem, size = 0x2c000, scoped, tag = 'input window, operand 0, single buffered']
    #allocation3 [shape = 's32[1]{0}', space=sflag, size = 0x4, scoped, tag = 'scoped memory for tpu_custom_call.1']
    #allocation4 [shape = 's32[1]{0}', space=sflag, size = 0x4, scoped, tag = 'scoped memory for tpu_custom_call.1']
    #allocation5 [shape = 'u8[8192]{0}', space=vmem, size = 0x2000, scoped, tag = 'output window, operand 0, single buffered']
    %6 = vsyncpa [#allocation3], 0
    %7 = vsyncpa [#allocation4], 0
    // Predicated region
    $region2: #{tpu_custom_call.1} parent=1 // pred_check
      _
    $region3: #{tpu_custom_call.1} parent=1 // pred_check_branch
      %9 = sbr.rel (0) target = $region5
    $region4: #{tpu_custom_call.1} parent=1 // pred_region
      %s11 = ssub.s32 5632, 5632
      %12 = vsyncadd [#allocation3], %s11
      %s13 = sshll.u32 [#allocation2], 4
      %s14 = int_to_ptr.vmem [resolvable:$true] %s13
      %19 = dma.hbm_to_vmem [thread:$0]  %s0, 5632, %s14, [#allocation3], 512, 512, 32
    $region5: #{tpu_custom_call.1} parent=1 // pred_fallthru
      _
    // Predicated region
    $region6: #{tpu_custom_call.1} parent=1 // pred_check
      _
    $region7: #{tpu_custom_call.1} parent=1 // pred_check_branch
      %21 = sbr.rel (0) target = $region9
    $region8: #{tpu_custom_call.1} parent=1 // pred_region
      %22 = dma.done [#allocation3], 5632
    $region9: #{tpu_custom_call.1} parent=1 // pred_fallthru
      _
    %v23 = vld [vmem:[#allocation2] sm:$0xff]
    %v24 = vld [vmem:[#allocation2 + $0x8] sm:$0xff]
    %v25 = vld [vmem:[#allocation2 + $0x10] sm:$0xff]
    %v26 = vld [vmem:[#allocation2 + $0x18] sm:$0xff]
    %s27 = scalar_lea.vmem [#allocation2], 32
    %v28 = vld [vmem:[%s27] ss:$8 sm:$0xf]
    %s29 = scalar_lea.vmem [#allocation2], 33
    %v30 = vld [vmem:[%s29] ss:$8 sm:$0xf]
    %v31 = vld [vmem:[#allocation2 + $0x22] ss:$0 sm:$0xff]
    %v32 = vld [vmem:[#allocation2 + $0x40] sm:$0xff]
    %v33 = vld [vmem:[#allocation2 + $0x48] sm:$0xff]
    %v34 = vld [vmem:[#allocation2 + $0x68] sm:$0xff]
    %v35 = vld [vmem:[#allocation2 + $0x88] sm:$0xff]
    %v36 = vld [vmem:[#allocation2 + $0xa8] sm:$0xff]
    %v37 = vld [vmem:[#allocation2 + $0xc8] sm:$0xff]
    %v38 = vld [vmem:[#allocation2 + $0xe8] sm:$0x1]
    %v39 = vld [vmem:[#allocation2 + $0x60] sm:$0xff]
    %v40 = vld [vmem:[#allocation2 + $0x80] sm:$0xff]
    %v41 = vld [vmem:[#allocation2 + $0xa0] sm:$0xff]
    %v42 = vld [vmem:[#allocation2 + $0xc0] sm:$0xff]
    %v43 = vld [vmem:[#allocation2 + $0xe0] sm:$0xff]
    %v44 = vld [vmem:[#allocation2 + $0x100] sm:$0xff]
    %v45 = vld [vmem:[#allocation2 + $0x120] sm:$0xff]
    %v46 = vld [vmem:[#allocation2 + $0x140] sm:$0xff]
    %vm47 = vcmask 64512
    %v49 = vsel %vm47, %v34, 0
    %v52 = vsel %vm47, %v35, 0
    %v55 = vsel %vm47, %v36, 0
    %v58 = vsel %vm47, %v37, 0
    %v61 = vsel %vm47, %v38, 0
    %63 = vmatprep.subr.mxu0 0.0
    %64 = vmatpush1.msra.mxu0 0.0
    %65 = vmatprep.subr.mxu0 0.0
    %66 = vmatpush1.msra.mxu0 0.0
    %67 = vmatprep.subr.mxu0 0.0
    %68 = vmatpush1.msra.mxu0 0.0
    %69 = vmatprep.subr.mxu0 0.0
    %70 = vmatpush1.msra.mxu0 0.0
    %71 = vmatprep.subr.mxu0 0.0
    %72 = vmatpush1.msra.mxu0 0.0
    %73 = vmatprep.subr.mxu0 0.0
    %74 = vmatpush1.msra.mxu0 0.0
    %75 = vmatprep.subr.mxu0 0.0
    %76 = vmatpush1.msra.mxu0 0.0
    %77 = vmatprep.subr.mxu0 0.0
    %78 = vmatpush1.msra.mxu0 0.0
    %79 = vmatprep.subr.mxu0 0.0
    %80 = vmatpush1.msra.mxu0 0.0
    %81 = vmatprep.subr.mxu0 0.0
    %82 = vmatpush1.msra.mxu0 0.0
    %83 = vmatprep.subr.mxu0 0.0
    %84 = vmatpush1.msra.mxu0 0.0
    %85 = vmatprep.subr.mxu0 0.0
    %86 = vmatpush1.msra.mxu0 0.0
    %87 = vmatprep.subr.mxu0 0.0
    %88 = vmatpush1.msra.mxu0 0.0
    %89 = vmatprep.subr.mxu0 0.0
    %90 = vmatpush1.msra.mxu0 0.0
    %91 = vmatprep.subr.mxu0 0.0
    %92 = vmatpush1.msra.mxu0 0.0
    %93 = vmatprep.subr.mxu0 %v24
    %94 = vmatpush1.msra.mxu0 %v23
    %95 = vmatprep.subr.mxu0 0.0
    %96 = vmatpush2.msra.mxu0 0.0
    %97 = vmatprep.subr.mxu0 0.0
    %98 = vmatpush2.msra.mxu0 0.0
    %99 = vmatprep.subr.mxu0 0.0
    %100 = vmatpush2.msra.mxu0 0.0
    %101 = vmatprep.subr.mxu0 0.0
    %102 = vmatpush2.msra.mxu0 0.0
    %103 = vmatprep.subr.mxu0 0.0
    %104 = vmatpush2.msra.mxu0 0.0
    %105 = vmatprep.subr.mxu0 0.0
    %106 = vmatpush2.msra.mxu0 0.0
    %107 = vmatprep.subr.mxu0 0.0
    %108 = vmatpush2.msra.mxu0 0.0
    %109 = vmatprep.subr.mxu0 0.0
    %110 = vmatpush2.msra.mxu0 0.0
    %111 = vmatprep.subr.mxu0 0.0
    %112 = vmatpush2.msra.mxu0 0.0
    %113 = vmatprep.subr.mxu0 0.0
    %114 = vmatpush2.msra.mxu0 0.0
    %115 = vmatprep.subr.mxu0 0.0
    %116 = vmatpush2.msra.mxu0 0.0
    %117 = vmatprep.subr.mxu0 0.0
    %118 = vmatpush2.msra.mxu0 0.0
    %119 = vmatprep.subr.mxu0 0.0
    %120 = vmatpush2.msra.mxu0 0.0
    %121 = vmatprep.subr.mxu0 0.0
    %122 = vmatpush2.msra.mxu0 0.0
    %123 = vmatprep.subr.mxu0 0.0
    %124 = vmatpush2.msra.mxu0 0.0
    %125 = vmatprep.subr.mxu0 0.0
    %126 = vmatpush2.msra.mxu0 0.0
    %127 = vmatprep.mubr.f32.mxu0 0.0
    %128 = vmatmul.mubr.f32.gmra.mxu0 %v49
    %v129 = vpop.f32.mrf.mxu0
    %v130 = vadd.f32 0.0, %v129
    %v131 = vpop.f32.mrf.mxu0
    %v132 = vadd.f32 0.0, %v131
    %133 = vmatprep.mubr.f32.mxu0 0.0
    %134 = vmatmul.mubr.f32.gmra.mxu0 %v52
    %v135 = vpop.f32.mrf.mxu0
    %v136 = vadd.f32 0.0, %v135
    %v137 = vpop.f32.mrf.mxu0
    %v138 = vadd.f32 0.0, %v137
    %139 = vmatprep.mubr.f32.mxu0 0.0
    %140 = vmatmul.mubr.f32.gmra.mxu0 %v55
    %v141 = vpop.f32.mrf.mxu0
    %v142 = vadd.f32 0.0, %v141
    %v143 = vpop.f32.mrf.mxu0
    %v144 = vadd.f32 0.0, %v143
    %145 = vmatprep.mubr.f32.mxu0 0.0
    %146 = vmatmul.mubr.f32.gmra.mxu0 %v58
    %v147 = vpop.f32.mrf.mxu0
    %v148 = vadd.f32 0.0, %v147
    %v149 = vpop.f32.mrf.mxu0
    %v150 = vadd.f32 0.0, %v149
    %151 = vmatprep.mubr.f32.mxu0 0.0
    %152 = vmatmul.mubr.f32.gmra.mxu0 %v61
    %v153 = vpop.f32.mrf.mxu0
    %v154 = vadd.f32 0.0, %v153
    %v155 = vpop.f32.mrf.mxu0
    %v156 = vadd.f32 0.0, %v155
    %157 = vdwg.mxu0
    %158 = vmatprep.subr.mxu0 0.0
    %159 = vmatpush1.msra.mxu0 0.0
    %160 = vmatprep.subr.mxu0 0.0
    %161 = vmatpush1.msra.mxu0 0.0
    %162 = vmatprep.subr.mxu0 0.0
    %163 = vmatpush1.msra.mxu0 0.0
    %164 = vmatprep.subr.mxu0 0.0
    %165 = vmatpush1.msra.mxu0 0.0
    %166 = vmatprep.subr.mxu0 0.0
    %167 = vmatpush1.msra.mxu0 0.0
    %168 = vmatprep.subr.mxu0 0.0
    %169 = vmatpush1.msra.mxu0 0.0
    %170 = vmatprep.subr.mxu0 0.0
    %171 = vmatpush1.msra.mxu0 0.0
    %172 = vmatprep.subr.mxu0 0.0
    %173 = vmatpush1.msra.mxu0 0.0
    %174 = vmatprep.subr.mxu0 0.0
    %175 = vmatpush1.msra.mxu0 0.0
    %176 = vmatprep.subr.mxu0 0.0
    %177 = vmatpush1.msra.mxu0 0.0
    %178 = vmatprep.subr.mxu0 0.0
    %179 = vmatpush1.msra.mxu0 0.0
    %180 = vmatprep.subr.mxu0 0.0
    %181 = vmatpush1.msra.mxu0 0.0
    %182 = vmatprep.subr.mxu0 0.0
    %183 = vmatpush1.msra.mxu0 0.0
    %184 = vmatprep.subr.mxu0 0.0
    %185 = vmatpush1.msra.mxu0 0.0
    %186 = vmatprep.subr.mxu0 0.0
    %187 = vmatpush1.msra.mxu0 0.0
    %188 = vmatprep.subr.mxu0 %v26
    %189 = vmatpush1.msra.mxu0 %v25
    %190 = vmatprep.subr.mxu0 0.0
    %191 = vmatpush2.msra.mxu0 0.0
    %192 = vmatprep.subr.mxu0 0.0
    %193 = vmatpush2.msra.mxu0 0.0
    %194 = vmatprep.subr.mxu0 0.0
    %195 = vmatpush2.msra.mxu0 0.0
    %196 = vmatprep.subr.mxu0 0.0
    %197 = vmatpush2.msra.mxu0 0.0
    %198 = vmatprep.subr.mxu0 0.0
    %199 = vmatpush2.msra.mxu0 0.0
    %200 = vmatprep.subr.mxu0 0.0
    %201 = vmatpush2.msra.mxu0 0.0
    %202 = vmatprep.subr.mxu0 0.0
    %203 = vmatpush2.msra.mxu0 0.0
    %204 = vmatprep.subr.mxu0 0.0
    %205 = vmatpush2.msra.mxu0 0.0
    %206 = vmatprep.subr.mxu0 0.0
    %207 = vmatpush2.msra.mxu0 0.0
    %208 = vmatprep.subr.mxu0 0.0
    %209 = vmatpush2.msra.mxu0 0.0
    %210 = vmatprep.subr.mxu0 0.0
    %211 = vmatpush2.msra.mxu0 0.0
    %212 = vmatprep.subr.mxu0 0.0
    %213 = vmatpush2.msra.mxu0 0.0
    %214 = vmatprep.subr.mxu0 0.0
    %215 = vmatpush2.msra.mxu0 0.0
    %216 = vmatprep.subr.mxu0 0.0
    %217 = vmatpush2.msra.mxu0 0.0
    %218 = vmatprep.subr.mxu0 0.0
    %219 = vmatpush2.msra.mxu0 0.0
    %220 = vmatprep.subr.mxu0 0.0
    %221 = vmatpush2.msra.mxu0 0.0
    %222 = vmatprep.mubr.f32.mxu0 0.0
    %223 = vmatmul.mubr.f32.gmra.mxu0 %v49
    %v224 = vpop.f32.mrf.mxu0
    %v225 = vadd.f32 0.0, %v224
    %v226 = vpop.f32.mrf.mxu0
    %v227 = vadd.f32 0.0, %v226
    %228 = vmatprep.mubr.f32.mxu0 0.0
    %229 = vmatmul.mubr.f32.gmra.mxu0 %v52
    %v230 = vpop.f32.mrf.mxu0
    %v231 = vadd.f32 0.0, %v230
    %v232 = vpop.f32.mrf.mxu0
    %v233 = vadd.f32 0.0, %v232
    %234 = vmatprep.mubr.f32.mxu0 0.0
    %235 = vmatmul.mubr.f32.gmra.mxu0 %v55
    %v236 = vpop.f32.mrf.mxu0
    %v237 = vadd.f32 0.0, %v236
    %v238 = vpop.f32.mrf.mxu0
    %v239 = vadd.f32 0.0, %v238
    %240 = vmatprep.mubr.f32.mxu0 0.0
    %241 = vmatmul.mubr.f32.gmra.mxu0 %v58
    %v242 = vpop.f32.mrf.mxu0
    %v243 = vadd.f32 0.0, %v242
    %v244 = vpop.f32.mrf.mxu0
    %v245 = vadd.f32 0.0, %v244
    %246 = vmatprep.mubr.f32.mxu0 0.0
    %247 = vmatmul.mubr.f32.gmra.mxu0 %v61
    %v248 = vpop.f32.mrf.mxu0
    %v249 = vadd.f32 0.0, %v248
    %v250 = vpop.f32.mrf.mxu0
    %v251 = vadd.f32 0.0, %v250
    %252 = vdwg.mxu0
    %v253 = vmax.f32 %v130, 0.0
    %v254 = vmax.f32 %v132, 0.0
    %v255 = vmax.f32 %v225, 0.0
    %v256 = vmax.f32 %v227, 0.0
    %v257 = vmax.f32 %v136, 0.0
    %v258 = vmax.f32 %v138, 0.0
    %v259 = vmax.f32 %v231, 0.0
    %v260 = vmax.f32 %v233, 0.0
    %v261 = vmax.f32 %v142, 0.0
    %v262 = vmax.f32 %v144, 0.0
    %v263 = vmax.f32 %v237, 0.0
    %v264 = vmax.f32 %v239, 0.0
    %v265 = vmax.f32 %v148, 0.0
    %v266 = vmax.f32 %v150, 0.0
    %v267 = vmax.f32 %v243, 0.0
    %v268 = vmax.f32 %v245, 0.0
    %v269 = vmax.f32 %v154, 0.0
    %v270 = vmax.f32 %v156, 0.0
    %v271 = vmax.f32 %v249, 0.0
    %v272 = vmax.f32 %v251, 0.0
    %vm273 = vcmask 269312
    %v275 = vsel %vm273, %v39, 0
    %v278 = vsel %vm273, %v40, 0
    %v281 = vsel %vm273, %v41, 0
    %v284 = vsel %vm273, %v42, 0
    %v287 = vsel %vm273, %v43, 0
    %v290 = vsel %vm273, %v44, 0
    %v293 = vsel %vm273, %v45, 0
    %v296 = vsel %vm273, %v46, 0
    %vm298 = vcmask 1040384
    %v300 = vsel %vm298, %v269, 0
    %v303 = vsel %vm298, %v270, 0
    %v306 = vsel %vm298, %v271, 0
    %v309 = vsel %vm298, %v272, 0
    %311 = vmatprep.subr.mxu0 0.0
    %312 = vmatpush1.msra.mxu0 0.0
    %313 = vmatprep.subr.mxu0 0.0
    %314 = vmatpush1.msra.mxu0 0.0
    %315 = vmatprep.subr.mxu0 0.0
    %316 = vmatpush1.msra.mxu0 0.0
    %317 = vmatprep.subr.mxu0 0.0
    %318 = vmatpush1.msra.mxu0 0.0
    %319 = vmatprep.subr.mxu0 0.0
    %320 = vmatpush1.msra.mxu0 0.0
    %321 = vmatprep.subr.mxu0 0.0
    %322 = vmatpush1.msra.mxu0 0.0
    %323 = vmatprep.subr.mxu0 0.0
    %324 = vmatpush1.msra.mxu0 0.0
    %325 = vmatprep.subr.mxu0 0.0
    %326 = vmatpush1.msra.mxu0 0.0
    %327 = vmatprep.subr.mxu0 0.0
    %328 = vmatpush1.msra.mxu0 0.0
    %329 = vmatprep.subr.mxu0 0.0
    %330 = vmatpush1.msra.mxu0 0.0
    %331 = vmatprep.subr.mxu0 0.0
    %332 = vmatpush1.msra.mxu0 0.0
    %333 = vmatprep.subr.mxu0 %v303
    %334 = vmatpush1.msra.mxu0 %v300
    %335 = vmatprep.subr.mxu0 %v266
    %336 = vmatpush1.msra.mxu0 %v265
    %337 = vmatprep.subr.mxu0 %v262
    %338 = vmatpush1.msra.mxu0 %v261
    %339 = vmatprep.subr.mxu0 %v258
    %340 = vmatpush1.msra.mxu0 %v257
    %341 = vmatprep.subr.mxu0 %v254
    %342 = vmatpush1.msra.mxu0 %v253
    %343 = vmatprep.subr.mxu0 0.0
    %344 = vmatpush2.msra.mxu0 0.0
    %345 = vmatprep.subr.mxu0 0.0
    %346 = vmatpush2.msra.mxu0 0.0
    %347 = vmatprep.subr.mxu0 0.0
    %348 = vmatpush2.msra.mxu0 0.0
    %349 = vmatprep.subr.mxu0 0.0
    %350 = vmatpush2.msra.mxu0 0.0
    %351 = vmatprep.subr.mxu0 0.0
    %352 = vmatpush2.msra.mxu0 0.0
    %353 = vmatprep.subr.mxu0 0.0
    %354 = vmatpush2.msra.mxu0 0.0
    %355 = vmatprep.subr.mxu0 0.0
    %356 = vmatpush2.msra.mxu0 0.0
    %357 = vmatprep.subr.mxu0 0.0
    %358 = vmatpush2.msra.mxu0 0.0
    %359 = vmatprep.subr.mxu0 0.0
    %360 = vmatpush2.msra.mxu0 0.0
    %361 = vmatprep.subr.mxu0 0.0
    %362 = vmatpush2.msra.mxu0 0.0
    %363 = vmatprep.subr.mxu0 0.0
    %364 = vmatpush2.msra.mxu0 0.0
    %365 = vmatprep.subr.mxu0 0.0
    %366 = vmatpush2.msra.mxu0 0.0
    %367 = vmatprep.subr.mxu0 0.0
    %368 = vmatpush2.msra.mxu0 0.0
    %369 = vmatprep.subr.mxu0 0.0
    %370 = vmatpush2.msra.mxu0 0.0
    %371 = vmatprep.subr.mxu0 0.0
    %372 = vmatpush2.msra.mxu0 0.0
    %373 = vmatprep.subr.mxu0 0.0
    %374 = vmatpush2.msra.mxu0 0.0
    %375 = vmatprep.mubr.f32.mxu0 0.0
    %376 = vmatmul.mubr.f32.gmra.mxu0 %v275
    %v377 = vpop.f32.mrf.mxu0
    %v378 = vadd.f32 0.0, %v377
    %v379 = vpop.f32.mrf.mxu0
    %v380 = vadd.f32 0.0, %v379
    %381 = vmatprep.mubr.f32.mxu0 0.0
    %382 = vmatmul.mubr.f32.gmra.mxu0 %v278
    %v383 = vpop.f32.mrf.mxu0
    %v384 = vadd.f32 0.0, %v383
    %v385 = vpop.f32.mrf.mxu0
    %v386 = vadd.f32 0.0, %v385
    %387 = vmatprep.mubr.f32.mxu0 0.0
    %388 = vmatmul.mubr.f32.gmra.mxu0 %v281
    %v389 = vpop.f32.mrf.mxu0
    %v390 = vadd.f32 0.0, %v389
    %v391 = vpop.f32.mrf.mxu0
    %v392 = vadd.f32 0.0, %v391
    %393 = vmatprep.mubr.f32.mxu0 0.0
    %394 = vmatmul.mubr.f32.gmra.mxu0 %v284
    %v395 = vpop.f32.mrf.mxu0
    %v396 = vadd.f32 0.0, %v395
    %v397 = vpop.f32.mrf.mxu0
    %v398 = vadd.f32 0.0, %v397
    %399 = vmatprep.mubr.f32.mxu0 0.0
    %400 = vmatmul.mubr.f32.gmra.mxu0 %v287
    %v401 = vpop.f32.mrf.mxu0
    %v402 = vadd.f32 0.0, %v401
    %v403 = vpop.f32.mrf.mxu0
    %v404 = vadd.f32 0.0, %v403
    %405 = vmatprep.mubr.f32.mxu0 0.0
    %406 = vmatmul.mubr.f32.gmra.mxu0 %v290
    %v407 = vpop.f32.mrf.mxu0
    %v408 = vadd.f32 0.0, %v407
    %v409 = vpop.f32.mrf.mxu0
    %v410 = vadd.f32 0.0, %v409
    %411 = vmatprep.mubr.f32.mxu0 0.0
    %412 = vmatmul.mubr.f32.gmra.mxu0 %v293
    %v413 = vpop.f32.mrf.mxu0
    %v414 = vadd.f32 0.0, %v413
    %v415 = vpop.f32.mrf.mxu0
    %v416 = vadd.f32 0.0, %v415
    %417 = vmatprep.mubr.f32.mxu0 0.0
    %418 = vmatmul.mubr.f32.gmra.mxu0 %v296
    %v419 = vpop.f32.mrf.mxu0
    %v420 = vadd.f32 0.0, %v419
    %v421 = vpop.f32.mrf.mxu0
    %v422 = vadd.f32 0.0, %v421
    %423 = vdwg.mxu0
    %424 = vmatprep.subr.mxu0 0.0
    %425 = vmatpush1.msra.mxu0 0.0
    %426 = vmatprep.subr.mxu0 0.0
    %427 = vmatpush1.msra.mxu0 0.0
    %428 = vmatprep.subr.mxu0 0.0
    %429 = vmatpush1.msra.mxu0 0.0
    %430 = vmatprep.subr.mxu0 0.0
    %431 = vmatpush1.msra.mxu0 0.0
    %432 = vmatprep.subr.mxu0 0.0
    %433 = vmatpush1.msra.mxu0 0.0
    %434 = vmatprep.subr.mxu0 0.0
    %435 = vmatpush1.msra.mxu0 0.0
    %436 = vmatprep.subr.mxu0 0.0
    %437 = vmatpush1.msra.mxu0 0.0
    %438 = vmatprep.subr.mxu0 0.0
    %439 = vmatpush1.msra.mxu0 0.0
    %440 = vmatprep.subr.mxu0 0.0
    %441 = vmatpush1.msra.mxu0 0.0
    %442 = vmatprep.subr.mxu0 0.0
    %443 = vmatpush1.msra.mxu0 0.0
    %444 = vmatprep.subr.mxu0 0.0
    %445 = vmatpush1.msra.mxu0 0.0
    %446 = vmatprep.subr.mxu0 %v309
    %447 = vmatpush1.msra.mxu0 %v306
    %448 = vmatprep.subr.mxu0 %v268
    %449 = vmatpush1.msra.mxu0 %v267
    %450 = vmatprep.subr.mxu0 %v264
    %451 = vmatpush1.msra.mxu0 %v263
    %452 = vmatprep.subr.mxu0 %v260
    %453 = vmatpush1.msra.mxu0 %v259
    %454 = vmatprep.subr.mxu0 %v256
    %455 = vmatpush1.msra.mxu0 %v255
    %456 = vmatprep.subr.mxu0 0.0
    %457 = vmatpush2.msra.mxu0 0.0
    %458 = vmatprep.subr.mxu0 0.0
    %459 = vmatpush2.msra.mxu0 0.0
    %460 = vmatprep.subr.mxu0 0.0
    %461 = vmatpush2.msra.mxu0 0.0
    %462 = vmatprep.subr.mxu0 0.0
    %463 = vmatpush2.msra.mxu0 0.0
    %464 = vmatprep.subr.mxu0 0.0
    %465 = vmatpush2.msra.mxu0 0.0
    %466 = vmatprep.subr.mxu0 0.0
    %467 = vmatpush2.msra.mxu0 0.0
    %468 = vmatprep.subr.mxu0 0.0
    %469 = vmatpush2.msra.mxu0 0.0
    %470 = vmatprep.subr.mxu0 0.0
    %471 = vmatpush2.msra.mxu0 0.0
    %472 = vmatprep.subr.mxu0 0.0
    %473 = vmatpush2.msra.mxu0 0.0
    %474 = vmatprep.subr.mxu0 0.0
    %475 = vmatpush2.msra.mxu0 0.0
    %476 = vmatprep.subr.mxu0 0.0
    %477 = vmatpush2.msra.mxu0 0.0
    %478 = vmatprep.subr.mxu0 0.0
    %479 = vmatpush2.msra.mxu0 0.0
    %480 = vmatprep.subr.mxu0 0.0
    %481 = vmatpush2.msra.mxu0 0.0
    %482 = vmatprep.subr.mxu0 0.0
    %483 = vmatpush2.msra.mxu0 0.0
    %484 = vmatprep.subr.mxu0 0.0
    %485 = vmatpush2.msra.mxu0 0.0
    %486 = vmatprep.subr.mxu0 0.0
    %487 = vmatpush2.msra.mxu0 0.0
    %488 = vmatprep.mubr.f32.mxu0 0.0
    %489 = vmatmul.mubr.f32.gmra.mxu0 %v275
    %v490 = vpop.f32.mrf.mxu0
    %v491 = vadd.f32 0.0, %v490
    %v492 = vpop.f32.mrf.mxu0
    %v493 = vadd.f32 0.0, %v492
    %494 = vmatprep.mubr.f32.mxu0 0.0
    %495 = vmatmul.mubr.f32.gmra.mxu0 %v278
    %v496 = vpop.f32.mrf.mxu0
    %v497 = vadd.f32 0.0, %v496
    %v498 = vpop.f32.mrf.mxu0
    %v499 = vadd.f32 0.0, %v498
    %500 = vmatprep.mubr.f32.mxu0 0.0
    %501 = vmatmul.mubr.f32.gmra.mxu0 %v281
    %v502 = vpop.f32.mrf.mxu0
    %v503 = vadd.f32 0.0, %v502
    %v504 = vpop.f32.mrf.mxu0
    %v505 = vadd.f32 0.0, %v504
    %506 = vmatprep.mubr.f32.mxu0 0.0
    %507 = vmatmul.mubr.f32.gmra.mxu0 %v284
    %v508 = vpop.f32.mrf.mxu0
    %v509 = vadd.f32 0.0, %v508
    %v510 = vpop.f32.mrf.mxu0
    %v511 = vadd.f32 0.0, %v510
    %512 = vmatprep.mubr.f32.mxu0 0.0
    %513 = vmatmul.mubr.f32.gmra.mxu0 %v287
    %v514 = vpop.f32.mrf.mxu0
    %v515 = vadd.f32 0.0, %v514
    %v516 = vpop.f32.mrf.mxu0
    %v517 = vadd.f32 0.0, %v516
    %518 = vmatprep.mubr.f32.mxu0 0.0
    %519 = vmatmul.mubr.f32.gmra.mxu0 %v290
    %v520 = vpop.f32.mrf.mxu0
    %v521 = vadd.f32 0.0, %v520
    %v522 = vpop.f32.mrf.mxu0
    %v523 = vadd.f32 0.0, %v522
    %524 = vmatprep.mubr.f32.mxu0 0.0
    %525 = vmatmul.mubr.f32.gmra.mxu0 %v293
    %v526 = vpop.f32.mrf.mxu0
    %v527 = vadd.f32 0.0, %v526
    %v528 = vpop.f32.mrf.mxu0
    %v529 = vadd.f32 0.0, %v528
    %530 = vmatprep.mubr.f32.mxu0 0.0
    %531 = vmatmul.mubr.f32.gmra.mxu0 %v296
    %v532 = vpop.f32.mrf.mxu0
    %v533 = vadd.f32 0.0, %v532
    %v534 = vpop.f32.mrf.mxu0
    %v535 = vadd.f32 0.0, %v534
    %536 = vdwg.mxu0
    %v537 = vmax.f32 %v378, 0.0
    %v538 = vmax.f32 %v380, 0.0
    %v539 = vmax.f32 %v491, 0.0
    %v540 = vmax.f32 %v493, 0.0
    %v541 = vmax.f32 %v384, 0.0
    %v542 = vmax.f32 %v386, 0.0
    %v543 = vmax.f32 %v497, 0.0
    %v544 = vmax.f32 %v499, 0.0
    %v545 = vmax.f32 %v390, 0.0
    %v546 = vmax.f32 %v392, 0.0
    %v547 = vmax.f32 %v503, 0.0
    %v548 = vmax.f32 %v505, 0.0
    %v549 = vmax.f32 %v396, 0.0
    %v550 = vmax.f32 %v398, 0.0
    %v551 = vmax.f32 %v509, 0.0
    %v552 = vmax.f32 %v511, 0.0
    %v553 = vmax.f32 %v402, 0.0
    %v554 = vmax.f32 %v404, 0.0
    %v555 = vmax.f32 %v515, 0.0
    %v556 = vmax.f32 %v517, 0.0
    %v557 = vmax.f32 %v408, 0.0
    %v558 = vmax.f32 %v410, 0.0
    %v559 = vmax.f32 %v521, 0.0
    %v560 = vmax.f32 %v523, 0.0
    %v561 = vmax.f32 %v414, 0.0
    %v562 = vmax.f32 %v416, 0.0
    %v563 = vmax.f32 %v527, 0.0
    %v564 = vmax.f32 %v529, 0.0
    %v565 = vmax.f32 %v420, 0.0
    %v566 = vmax.f32 %v422, 0.0
    %v567 = vmax.f32 %v533, 0.0
    %v568 = vmax.f32 %v535, 0.0
    %v569 = vcvt.f32.s32.to.zero.pseudo %v28
    %v570 = vlaneseq
    %v571 = vshrl.u32 %v570, 7
    %v572 = vadd.s32 %v571, 8
    %v573 = vadd.s32 %v571, 16
    %v574 = vadd.s32 %v571, 24
    %v575 = vadd.s32 %v571, 32
    %v576 = vadd.s32 %v571, 40
    %v577 = vadd.s32 %v571, 48
    %v578 = vadd.s32 %v571, 56
    %v579 = vadd.s32 %v571, 64
    %v580 = vadd.s32 %v571, 72
    %v581 = vadd.s32 %v571, 80
    %v582 = vadd.s32 %v571, 88
    %v583 = vadd.s32 %v571, 96
    %v584 = vadd.s32 %v571, 104
    %v585 = vadd.s32 %v571, 112
    %v586 = vadd.s32 %v571, 120
    %v587 = vadd.s32 %v571, 128
    %v588 = vadd.s32 %v571, 136
    %v589 = vadd.s32 %v571, 144
    %v590 = vadd.s32 %v571, 152
    %v591 = vadd.s32 %v571, 160
    %v592 = vadd.s32 %v571, 168
    %v593 = vadd.s32 %v571, 176
    %v594 = vadd.s32 %v571, 184
    %v595 = vadd.s32 %v571, 192
    %v596 = vadd.s32 %v571, 200
    %v597 = vadd.s32 %v571, 208
    %v598 = vadd.s32 %v571, 216
    %v599 = vadd.s32 %v571, 224
    %v600 = vadd.s32 %v571, 232
    %v601 = vadd.s32 %v571, 240
    %v602 = vadd.s32 %v571, 248
    %v603 = vlaneseq
    %v604 = vshrl.u32 %v603, 7
    %v605 = vsub.s32 0, %v604
    %v606 = vrot.slane %v569, %v605
    %v607 = vlaneseq
    %v608 = vshrl.u32 %v607, 7
    %v609 = vsub.s32 1, %v608
    %v610 = vrot.slane %v569, %v609
    %v611 = vlaneseq
    %v612 = vshrl.u32 %v611, 7
    %v613 = vsub.s32 2, %v612
    %v614 = vrot.slane %v569, %v613
    %v615 = vlaneseq
    %v616 = vshrl.u32 %v615, 7
    %v617 = vsub.s32 3, %v616
    %v618 = vrot.slane %v569, %v617
    %vm619 = vcmp.eq.s32.totalorder %v606, %v571
    %vm620 = vcmp.eq.s32.totalorder %v610, %v571
    %vm621 = vcmp.eq.s32.totalorder %v614, %v571
    %vm622 = vcmp.eq.s32.totalorder %v618, %v571
    %vm623 = vcmp.eq.s32.totalorder %v606, %v572
    %vm624 = vcmp.eq.s32.totalorder %v610, %v572
    %vm625 = vcmp.eq.s32.totalorder %v614, %v572
    %vm626 = vcmp.eq.s32.totalorder %v618, %v572
    %vm627 = vcmp.eq.s32.totalorder %v606, %v573
    %vm628 = vcmp.eq.s32.totalorder %v610, %v573
    %vm629 = vcmp.eq.s32.totalorder %v614, %v573
    %vm630 = vcmp.eq.s32.totalorder %v618, %v573
    %vm631 = vcmp.eq.s32.totalorder %v606, %v574
    %vm632 = vcmp.eq.s32.totalorder %v610, %v574
    %vm633 = vcmp.eq.s32.totalorder %v614, %v574
    %vm634 = vcmp.eq.s32.totalorder %v618, %v574
    %vm635 = vcmp.eq.s32.totalorder %v606, %v575
    %vm636 = vcmp.eq.s32.totalorder %v610, %v575
    %vm637 = vcmp.eq.s32.totalorder %v614, %v575
    %vm638 = vcmp.eq.s32.totalorder %v618, %v575
    %vm639 = vcmp.eq.s32.totalorder %v606, %v576
    %vm640 = vcmp.eq.s32.totalorder %v610, %v576
    %vm641 = vcmp.eq.s32.totalorder %v614, %v576
    %vm642 = vcmp.eq.s32.totalorder %v618, %v576
    %vm643 = vcmp.eq.s32.totalorder %v606, %v577
    %vm644 = vcmp.eq.s32.totalorder %v610, %v577
    %vm645 = vcmp.eq.s32.totalorder %v614, %v577
    %vm646 = vcmp.eq.s32.totalorder %v618, %v577
    %vm647 = vcmp.eq.s32.totalorder %v606, %v578
    %vm648 = vcmp.eq.s32.totalorder %v610, %v578
    %vm649 = vcmp.eq.s32.totalorder %v614, %v578
    %vm650 = vcmp.eq.s32.totalorder %v618, %v578
    %vm651 = vcmp.eq.s32.totalorder %v606, %v579
    %vm652 = vcmp.eq.s32.totalorder %v610, %v579
    %vm653 = vcmp.eq.s32.totalorder %v614, %v579
    %vm654 = vcmp.eq.s32.totalorder %v618, %v579
    %vm655 = vcmp.eq.s32.totalorder %v606, %v580
    %vm656 = vcmp.eq.s32.totalorder %v610, %v580
    %vm657 = vcmp.eq.s32.totalorder %v614, %v580
    %vm658 = vcmp.eq.s32.totalorder %v618, %v580
    %vm659 = vcmp.eq.s32.totalorder %v606, %v581
    %vm660 = vcmp.eq.s32.totalorder %v610, %v581
    %vm661 = vcmp.eq.s32.totalorder %v614, %v581
    %vm662 = vcmp.eq.s32.totalorder %v618, %v581
    %vm663 = vcmp.eq.s32.totalorder %v606, %v582
    %vm664 = vcmp.eq.s32.totalorder %v610, %v582
    %vm665 = vcmp.eq.s32.totalorder %v614, %v582
    %vm666 = vcmp.eq.s32.totalorder %v618, %v582
    %vm667 = vcmp.eq.s32.totalorder %v606, %v583
    %vm668 = vcmp.eq.s32.totalorder %v610, %v583
    %vm669 = vcmp.eq.s32.totalorder %v614, %v583
    %vm670 = vcmp.eq.s32.totalorder %v618, %v583
    %vm671 = vcmp.eq.s32.totalorder %v606, %v584
    %vm672 = vcmp.eq.s32.totalorder %v610, %v584
    %vm673 = vcmp.eq.s32.totalorder %v614, %v584
    %vm674 = vcmp.eq.s32.totalorder %v618, %v584
    %vm675 = vcmp.eq.s32.totalorder %v606, %v585
    %vm676 = vcmp.eq.s32.totalorder %v610, %v585
    %vm677 = vcmp.eq.s32.totalorder %v614, %v585
    %vm678 = vcmp.eq.s32.totalorder %v618, %v585
    %vm679 = vcmp.eq.s32.totalorder %v606, %v586
    %vm680 = vcmp.eq.s32.totalorder %v610, %v586
    %vm681 = vcmp.eq.s32.totalorder %v614, %v586
    %vm682 = vcmp.eq.s32.totalorder %v618, %v586
    %vm683 = vcmp.eq.s32.totalorder %v606, %v587
    %vm684 = vcmp.eq.s32.totalorder %v610, %v587
    %vm685 = vcmp.eq.s32.totalorder %v614, %v587
    %vm686 = vcmp.eq.s32.totalorder %v618, %v587
    %vm687 = vcmp.eq.s32.totalorder %v606, %v588
    %vm688 = vcmp.eq.s32.totalorder %v610, %v588
    %vm689 = vcmp.eq.s32.totalorder %v614, %v588
    %vm690 = vcmp.eq.s32.totalorder %v618, %v588
    %vm691 = vcmp.eq.s32.totalorder %v606, %v589
    %vm692 = vcmp.eq.s32.totalorder %v610, %v589
    %vm693 = vcmp.eq.s32.totalorder %v614, %v589
    %vm694 = vcmp.eq.s32.totalorder %v618, %v589
    %vm695 = vcmp.eq.s32.totalorder %v606, %v590
    %vm696 = vcmp.eq.s32.totalorder %v610, %v590
    %vm697 = vcmp.eq.s32.totalorder %v614, %v590
    %vm698 = vcmp.eq.s32.totalorder %v618, %v590
    %vm699 = vcmp.eq.s32.totalorder %v606, %v591
    %vm700 = vcmp.eq.s32.totalorder %v610, %v591
    %vm701 = vcmp.eq.s32.totalorder %v614, %v591
    %vm702 = vcmp.eq.s32.totalorder %v618, %v591
    %vm703 = vcmp.eq.s32.totalorder %v606, %v592
    %vm704 = vcmp.eq.s32.totalorder %v610, %v592
    %vm705 = vcmp.eq.s32.totalorder %v614, %v592
    %vm706 = vcmp.eq.s32.totalorder %v618, %v592
    %vm707 = vcmp.eq.s32.totalorder %v606, %v593
    %vm708 = vcmp.eq.s32.totalorder %v610, %v593
    %vm709 = vcmp.eq.s32.totalorder %v614, %v593
    %vm710 = vcmp.eq.s32.totalorder %v618, %v593
    %vm711 = vcmp.eq.s32.totalorder %v606, %v594
    %vm712 = vcmp.eq.s32.totalorder %v610, %v594
    %vm713 = vcmp.eq.s32.totalorder %v614, %v594
    %vm714 = vcmp.eq.s32.totalorder %v618, %v594
    %vm715 = vcmp.eq.s32.totalorder %v606, %v595
    %vm716 = vcmp.eq.s32.totalorder %v610, %v595
    %vm717 = vcmp.eq.s32.totalorder %v614, %v595
    %vm718 = vcmp.eq.s32.totalorder %v618, %v595
    %vm719 = vcmp.eq.s32.totalorder %v606, %v596
    %vm720 = vcmp.eq.s32.totalorder %v610, %v596
    %vm721 = vcmp.eq.s32.totalorder %v614, %v596
    %vm722 = vcmp.eq.s32.totalorder %v618, %v596
    %vm723 = vcmp.eq.s32.totalorder %v606, %v597
    %vm724 = vcmp.eq.s32.totalorder %v610, %v597
    %vm725 = vcmp.eq.s32.totalorder %v614, %v597
    %vm726 = vcmp.eq.s32.totalorder %v618, %v597
    %vm727 = vcmp.eq.s32.totalorder %v606, %v598
    %vm728 = vcmp.eq.s32.totalorder %v610, %v598
    %vm729 = vcmp.eq.s32.totalorder %v614, %v598
    %vm730 = vcmp.eq.s32.totalorder %v618, %v598
    %vm731 = vcmp.eq.s32.totalorder %v606, %v599
    %vm732 = vcmp.eq.s32.totalorder %v610, %v599
    %vm733 = vcmp.eq.s32.totalorder %v614, %v599
    %vm734 = vcmp.eq.s32.totalorder %v618, %v599
    %vm735 = vcmp.eq.s32.totalorder %v606, %v600
    %vm736 = vcmp.eq.s32.totalorder %v610, %v600
    %vm737 = vcmp.eq.s32.totalorder %v614, %v600
    %vm738 = vcmp.eq.s32.totalorder %v618, %v600
    %vm739 = vcmp.eq.s32.totalorder %v606, %v601
    %vm740 = vcmp.eq.s32.totalorder %v610, %v601
    %vm741 = vcmp.eq.s32.totalorder %v614, %v601
    %vm742 = vcmp.eq.s32.totalorder %v618, %v601
    %vm743 = vcmp.eq.s32.totalorder %v606, %v602
    %vm744 = vcmp.eq.s32.totalorder %v610, %v602
    %vm745 = vcmp.eq.s32.totalorder %v614, %v602
    %vm746 = vcmp.eq.s32.totalorder %v618, %v602
    %v747 = vsel %vm619, 1, 0
    %v748 = vsel %vm620, 1, 0
    %v749 = vsel %vm621, 1, 0
    %v750 = vsel %vm622, 1, 0
    %v751 = vsel %vm623, 1, 0
    %v752 = vsel %vm624, 1, 0
    %v753 = vsel %vm625, 1, 0
    %v754 = vsel %vm626, 1, 0
    %v755 = vsel %vm627, 1, 0
    %v756 = vsel %vm628, 1, 0
    %v757 = vsel %vm629, 1, 0
    %v758 = vsel %vm630, 1, 0
    %v759 = vsel %vm631, 1, 0
    %v760 = vsel %vm632, 1, 0
    %v761 = vsel %vm633, 1, 0
    %v762 = vsel %vm634, 1, 0
    %v763 = vsel %vm635, 1, 0
    %v764 = vsel %vm636, 1, 0
    %v765 = vsel %vm637, 1, 0
    %v766 = vsel %vm638, 1, 0
    %v767 = vsel %vm639, 1, 0
    %v768 = vsel %vm640, 1, 0
    %v769 = vsel %vm641, 1, 0
    %v770 = vsel %vm642, 1, 0
    %v771 = vsel %vm643, 1, 0
    %v772 = vsel %vm644, 1, 0
    %v773 = vsel %vm645, 1, 0
    %v774 = vsel %vm646, 1, 0
    %v775 = vsel %vm647, 1, 0
    %v776 = vsel %vm648, 1, 0
    %v777 = vsel %vm649, 1, 0
    %v778 = vsel %vm650, 1, 0
    %v779 = vsel %vm651, 1, 0
    %v780 = vsel %vm652, 1, 0
    %v781 = vsel %vm653, 1, 0
    %v782 = vsel %vm654, 1, 0
    %v783 = vsel %vm655, 1, 0
    %v784 = vsel %vm656, 1, 0
    %v785 = vsel %vm657, 1, 0
    %v786 = vsel %vm658, 1, 0
    %v787 = vsel %vm659, 1, 0
    %v788 = vsel %vm660, 1, 0
    %v789 = vsel %vm661, 1, 0
    %v790 = vsel %vm662, 1, 0
    %v791 = vsel %vm663, 1, 0
    %v792 = vsel %vm664, 1, 0
    %v793 = vsel %vm665, 1, 0
    %v794 = vsel %vm666, 1, 0
    %v795 = vsel %vm667, 1, 0
    %v796 = vsel %vm668, 1, 0
    %v797 = vsel %vm669, 1, 0
    %v798 = vsel %vm670, 1, 0
    %v799 = vsel %vm671, 1, 0
    %v800 = vsel %vm672, 1, 0
    %v801 = vsel %vm673, 1, 0
    %v802 = vsel %vm674, 1, 0
    %v803 = vsel %vm675, 1, 0
    %v804 = vsel %vm676, 1, 0
    %v805 = vsel %vm677, 1, 0
    %v806 = vsel %vm678, 1, 0
    %v807 = vsel %vm679, 1, 0
    %v808 = vsel %vm680, 1, 0
    %v809 = vsel %vm681, 1, 0
    %v810 = vsel %vm682, 1, 0
    %v811 = vsel %vm683, 1, 0
    %v812 = vsel %vm684, 1, 0
    %v813 = vsel %vm685, 1, 0
    %v814 = vsel %vm686, 1, 0
    %v815 = vsel %vm687, 1, 0
    %v816 = vsel %vm688, 1, 0
    %v817 = vsel %vm689, 1, 0
    %v818 = vsel %vm690, 1, 0
    %v819 = vsel %vm691, 1, 0
    %v820 = vsel %vm692, 1, 0
    %v821 = vsel %vm693, 1, 0
    %v822 = vsel %vm694, 1, 0
    %v823 = vsel %vm695, 1, 0
    %v824 = vsel %vm696, 1, 0
    %v825 = vsel %vm697, 1, 0
    %v826 = vsel %vm698, 1, 0
    %v827 = vsel %vm699, 1, 0
    %v828 = vsel %vm700, 1, 0
    %v829 = vsel %vm701, 1, 0
    %v830 = vsel %vm702, 1, 0
    %v831 = vsel %vm703, 1, 0
    %v832 = vsel %vm704, 1, 0
    %v833 = vsel %vm705, 1, 0
    %v834 = vsel %vm706, 1, 0
    %v835 = vsel %vm707, 1, 0
    %v836 = vsel %vm708, 1, 0
    %v837 = vsel %vm709, 1, 0
    %v838 = vsel %vm710, 1, 0
    %v839 = vsel %vm711, 1, 0
    %v840 = vsel %vm712, 1, 0
    %v841 = vsel %vm713, 1, 0
    %v842 = vsel %vm714, 1, 0
    %v843 = vsel %vm715, 1, 0
    %v844 = vsel %vm716, 1, 0
    %v845 = vsel %vm717, 1, 0
    %v846 = vsel %vm718, 1, 0
    %v847 = vsel %vm719, 1, 0
    %v848 = vsel %vm720, 1, 0
    %v849 = vsel %vm721, 1, 0
    %v850 = vsel %vm722, 1, 0
    %v851 = vsel %vm723, 1, 0
    %v852 = vsel %vm724, 1, 0
    %v853 = vsel %vm725, 1, 0
    %v854 = vsel %vm726, 1, 0
    %v855 = vsel %vm727, 1, 0
    %v856 = vsel %vm728, 1, 0
    %v857 = vsel %vm729, 1, 0
    %v858 = vsel %vm730, 1, 0
    %v859 = vsel %vm731, 1, 0
    %v860 = vsel %vm732, 1, 0
    %v861 = vsel %vm733, 1, 0
    %v862 = vsel %vm734, 1, 0
    %v863 = vsel %vm735, 1, 0
    %v864 = vsel %vm736, 1, 0
    %v865 = vsel %vm737, 1, 0
    %v866 = vsel %vm738, 1, 0
    %v867 = vsel %vm739, 1, 0
    %v868 = vsel %vm740, 1, 0
    %v869 = vsel %vm741, 1, 0
    %v870 = vsel %vm742, 1, 0
    %v871 = vsel %vm743, 1, 0
    %v872 = vsel %vm744, 1, 0
    %v873 = vsel %vm745, 1, 0
    %v874 = vsel %vm746, 1, 0
    %v875 = vcvt.s32.f32 %v747
    %v876 = vcvt.s32.f32 %v748
    %v877 = vcvt.s32.f32 %v749
    %v878 = vcvt.s32.f32 %v750
    %v879 = vcvt.s32.f32 %v751
    %v880 = vcvt.s32.f32 %v752
    %v881 = vcvt.s32.f32 %v753
    %v882 = vcvt.s32.f32 %v754
    %v883 = vcvt.s32.f32 %v755
    %v884 = vcvt.s32.f32 %v756
    %v885 = vcvt.s32.f32 %v757
    %v886 = vcvt.s32.f32 %v758
    %v887 = vcvt.s32.f32 %v759
    %v888 = vcvt.s32.f32 %v760
    %v889 = vcvt.s32.f32 %v761
    %v890 = vcvt.s32.f32 %v762
    %v891 = vcvt.s32.f32 %v763
    %v892 = vcvt.s32.f32 %v764
    %v893 = vcvt.s32.f32 %v765
    %v894 = vcvt.s32.f32 %v766
    %v895 = vcvt.s32.f32 %v767
    %v896 = vcvt.s32.f32 %v768
    %v897 = vcvt.s32.f32 %v769
    %v898 = vcvt.s32.f32 %v770
    %v899 = vcvt.s32.f32 %v771
    %v900 = vcvt.s32.f32 %v772
    %v901 = vcvt.s32.f32 %v773
    %v902 = vcvt.s32.f32 %v774
    %v903 = vcvt.s32.f32 %v775
    %v904 = vcvt.s32.f32 %v776
    %v905 = vcvt.s32.f32 %v777
    %v906 = vcvt.s32.f32 %v778
    %v907 = vcvt.s32.f32 %v779
    %v908 = vcvt.s32.f32 %v780
    %v909 = vcvt.s32.f32 %v781
    %v910 = vcvt.s32.f32 %v782
    %v911 = vcvt.s32.f32 %v783
    %v912 = vcvt.s32.f32 %v784
    %v913 = vcvt.s32.f32 %v785
    %v914 = vcvt.s32.f32 %v786
    %v915 = vcvt.s32.f32 %v787
    %v916 = vcvt.s32.f32 %v788
    %v917 = vcvt.s32.f32 %v789
    %v918 = vcvt.s32.f32 %v790
    %v919 = vcvt.s32.f32 %v791
    %v920 = vcvt.s32.f32 %v792
    %v921 = vcvt.s32.f32 %v793
    %v922 = vcvt.s32.f32 %v794
    %v923 = vcvt.s32.f32 %v795
    %v924 = vcvt.s32.f32 %v796
    %v925 = vcvt.s32.f32 %v797
    %v926 = vcvt.s32.f32 %v798
    %v927 = vcvt.s32.f32 %v799
    %v928 = vcvt.s32.f32 %v800
    %v929 = vcvt.s32.f32 %v801
    %v930 = vcvt.s32.f32 %v802
    %v931 = vcvt.s32.f32 %v803
    %v932 = vcvt.s32.f32 %v804
    %v933 = vcvt.s32.f32 %v805
    %v934 = vcvt.s32.f32 %v806
    %v935 = vcvt.s32.f32 %v807
    %v936 = vcvt.s32.f32 %v808
    %v937 = vcvt.s32.f32 %v809
    %v938 = vcvt.s32.f32 %v810
    %v939 = vcvt.s32.f32 %v811
    %v940 = vcvt.s32.f32 %v812
    %v941 = vcvt.s32.f32 %v813
    %v942 = vcvt.s32.f32 %v814
    %v943 = vcvt.s32.f32 %v815
    %v944 = vcvt.s32.f32 %v816
    %v945 = vcvt.s32.f32 %v817
    %v946 = vcvt.s32.f32 %v818
    %v947 = vcvt.s32.f32 %v819
    %v948 = vcvt.s32.f32 %v820
    %v949 = vcvt.s32.f32 %v821
    %v950 = vcvt.s32.f32 %v822
    %v951 = vcvt.s32.f32 %v823
    %v952 = vcvt.s32.f32 %v824
    %v953 = vcvt.s32.f32 %v825
    %v954 = vcvt.s32.f32 %v826
    %v955 = vcvt.s32.f32 %v827
    %v956 = vcvt.s32.f32 %v828
    %v957 = vcvt.s32.f32 %v829
    %v958 = vcvt.s32.f32 %v830
    %v959 = vcvt.s32.f32 %v831
    %v960 = vcvt.s32.f32 %v832
    %v961 = vcvt.s32.f32 %v833
    %v962 = vcvt.s32.f32 %v834
    %v963 = vcvt.s32.f32 %v835
    %v964 = vcvt.s32.f32 %v836
    %v965 = vcvt.s32.f32 %v837
    %v966 = vcvt.s32.f32 %v838
    %v967 = vcvt.s32.f32 %v839
    %v968 = vcvt.s32.f32 %v840
    %v969 = vcvt.s32.f32 %v841
    %v970 = vcvt.s32.f32 %v842
    %v971 = vcvt.s32.f32 %v843
    %v972 = vcvt.s32.f32 %v844
    %v973 = vcvt.s32.f32 %v845
    %v974 = vcvt.s32.f32 %v846
    %v975 = vcvt.s32.f32 %v847
    %v976 = vcvt.s32.f32 %v848
    %v977 = vcvt.s32.f32 %v849
    %v978 = vcvt.s32.f32 %v850
    %v979 = vcvt.s32.f32 %v851
    %v980 = vcvt.s32.f32 %v852
    %v981 = vcvt.s32.f32 %v853
    %v982 = vcvt.s32.f32 %v854
    %v983 = vcvt.s32.f32 %v855
    %v984 = vcvt.s32.f32 %v856
    %v985 = vcvt.s32.f32 %v857
    %v986 = vcvt.s32.f32 %v858
    %v987 = vcvt.s32.f32 %v859
    %v988 = vcvt.s32.f32 %v860
    %v989 = vcvt.s32.f32 %v861
    %v990 = vcvt.s32.f32 %v862
    %v991 = vcvt.s32.f32 %v863
    %v992 = vcvt.s32.f32 %v864
    %v993 = vcvt.s32.f32 %v865
    %v994 = vcvt.s32.f32 %v866
    %v995 = vcvt.s32.f32 %v867
    %v996 = vcvt.s32.f32 %v868
    %v997 = vcvt.s32.f32 %v869
    %v998 = vcvt.s32.f32 %v870
    %v999 = vcvt.s32.f32 %v871
    %v1000 = vcvt.s32.f32 %v872
    %v1001 = vcvt.s32.f32 %v873
    %v1002 = vcvt.s32.f32 %v874
    %1003 = vmatprep.subr.mxu0 %v936
    %1004 = vmatpush1.msra.mxu0 %v935
    %1005 = vmatprep.subr.mxu0 %v932
    %1006 = vmatpush1.msra.mxu0 %v931
    %1007 = vmatprep.subr.mxu0 %v928
    %1008 = vmatpush1.msra.mxu0 %v927
    %1009 = vmatprep.subr.mxu0 %v924
    %1010 = vmatpush1.msra.mxu0 %v923
    %1011 = vmatprep.subr.mxu0 %v920
    %1012 = vmatpush1.msra.mxu0 %v919
    %1013 = vmatprep.subr.mxu0 %v916
    %1014 = vmatpush1.msra.mxu0 %v915
    %1015 = vmatprep.subr.mxu0 %v912
    %1016 = vmatpush1.msra.mxu0 %v911
    %1017 = vmatprep.subr.mxu0 %v908
    %1018 = vmatpush1.msra.mxu0 %v907
    %1019 = vmatprep.subr.mxu0 %v904
    %1020 = vmatpush1.msra.mxu0 %v903
    %1021 = vmatprep.subr.mxu0 %v900
    %1022 = vmatpush1.msra.mxu0 %v899
    %1023 = vmatprep.subr.mxu0 %v896
    %1024 = vmatpush1.msra.mxu0 %v895
    %1025 = vmatprep.subr.mxu0 %v892
    %1026 = vmatpush1.msra.mxu0 %v891
    %1027 = vmatprep.subr.mxu0 %v888
    %1028 = vmatpush1.msra.mxu0 %v887
    %1029 = vmatprep.subr.mxu0 %v884
    %1030 = vmatpush1.msra.mxu0 %v883
    %1031 = vmatprep.subr.mxu0 %v880
    %1032 = vmatpush1.msra.mxu0 %v879
    %1033 = vmatprep.subr.mxu0 %v876
    %1034 = vmatpush1.msra.mxu0 %v875
    %1035 = vmatprep.subr.mxu0 %v1000
    %1036 = vmatpush2.msra.mxu0 %v999
    %1037 = vmatprep.subr.mxu0 %v996
    %1038 = vmatpush2.msra.mxu0 %v995
    %1039 = vmatprep.subr.mxu0 %v992
    %1040 = vmatpush2.msra.mxu0 %v991
    %1041 = vmatprep.subr.mxu0 %v988
    %1042 = vmatpush2.msra.mxu0 %v987
    %1043 = vmatprep.subr.mxu0 %v984
    %1044 = vmatpush2.msra.mxu0 %v983
    %1045 = vmatprep.subr.mxu0 %v980
    %1046 = vmatpush2.msra.mxu0 %v979
    %1047 = vmatprep.subr.mxu0 %v976
    %1048 = vmatpush2.msra.mxu0 %v975
    %1049 = vmatprep.subr.mxu0 %v972
    %1050 = vmatpush2.msra.mxu0 %v971
    %1051 = vmatprep.subr.mxu0 %v968
    %1052 = vmatpush2.msra.mxu0 %v967
    %1053 = vmatprep.subr.mxu0 %v964
    %1054 = vmatpush2.msra.mxu0 %v963
    %1055 = vmatprep.subr.mxu0 %v960
    %1056 = vmatpush2.msra.mxu0 %v959
    %1057 = vmatprep.subr.mxu0 %v956
    %1058 = vmatpush2.msra.mxu0 %v955
    %1059 = vmatprep.subr.mxu0 %v952
    %1060 = vmatpush2.msra.mxu0 %v951
    %1061 = vmatprep.subr.mxu0 %v948
    %1062 = vmatpush2.msra.mxu0 %v947
    %1063 = vmatprep.subr.mxu0 %v944
    %1064 = vmatpush2.msra.mxu0 %v943
    %1065 = vmatprep.subr.mxu0 %v940
    %1066 = vmatpush2.msra.mxu0 %v939
    %1067 = vmatprep.mubr.f32.mxu0 %v33
    %1068 = vmatmul.mubr.f32.gmra.mxu0 %v32
    %v1069 = vpop.f32.mrf.mxu0
    %v1070 = vadd.f32 0.0, %v1069
    %v1071 = vpop.f32.mrf.mxu0
    %v1072 = vadd.f32 0.0, %v1071
    %1073 = vdwg.mxu0
    %1074 = vmatprep.subr.mxu0 %v938
    %1075 = vmatpush1.msra.mxu0 %v937
    %1076 = vmatprep.subr.mxu0 %v934
    %1077 = vmatpush1.msra.mxu0 %v933
    %1078 = vmatprep.subr.mxu0 %v930
    %1079 = vmatpush1.msra.mxu0 %v929
    %1080 = vmatprep.subr.mxu0 %v926
    %1081 = vmatpush1.msra.mxu0 %v925
    %1082 = vmatprep.subr.mxu0 %v922
    %1083 = vmatpush1.msra.mxu0 %v921
    %1084 = vmatprep.subr.mxu0 %v918
    %1085 = vmatpush1.msra.mxu0 %v917
    %1086 = vmatprep.subr.mxu0 %v914
    %1087 = vmatpush1.msra.mxu0 %v913
    %1088 = vmatprep.subr.mxu0 %v910
    %1089 = vmatpush1.msra.mxu0 %v909
    %1090 = vmatprep.subr.mxu0 %v906
    %1091 = vmatpush1.msra.mxu0 %v905
    %1092 = vmatprep.subr.mxu0 %v902
    %1093 = vmatpush1.msra.mxu0 %v901
    %1094 = vmatprep.subr.mxu0 %v898
    %1095 = vmatpush1.msra.mxu0 %v897
    %1096 = vmatprep.subr.mxu0 %v894
    %1097 = vmatpush1.msra.mxu0 %v893
    %1098 = vmatprep.subr.mxu0 %v890
    %1099 = vmatpush1.msra.mxu0 %v889
    %1100 = vmatprep.subr.mxu0 %v886
    %1101 = vmatpush1.msra.mxu0 %v885
    %1102 = vmatprep.subr.mxu0 %v882
    %1103 = vmatpush1.msra.mxu0 %v881
    %1104 = vmatprep.subr.mxu0 %v878
    %1105 = vmatpush1.msra.mxu0 %v877
    %1106 = vmatprep.subr.mxu0 %v1002
    %1107 = vmatpush2.msra.mxu0 %v1001
    %1108 = vmatprep.subr.mxu0 %v998
    %1109 = vmatpush2.msra.mxu0 %v997
    %1110 = vmatprep.subr.mxu0 %v994
    %1111 = vmatpush2.msra.mxu0 %v993
    %1112 = vmatprep.subr.mxu0 %v990
    %1113 = vmatpush2.msra.mxu0 %v989
    %1114 = vmatprep.subr.mxu0 %v986
    %1115 = vmatpush2.msra.mxu0 %v985
    %1116 = vmatprep.subr.mxu0 %v982
    %1117 = vmatpush2.msra.mxu0 %v981
    %1118 = vmatprep.subr.mxu0 %v978
    %1119 = vmatpush2.msra.mxu0 %v977
    %1120 = vmatprep.subr.mxu0 %v974
    %1121 = vmatpush2.msra.mxu0 %v973
    %1122 = vmatprep.subr.mxu0 %v970
    %1123 = vmatpush2.msra.mxu0 %v969
    %1124 = vmatprep.subr.mxu0 %v966
    %1125 = vmatpush2.msra.mxu0 %v965
    %1126 = vmatprep.subr.mxu0 %v962
    %1127 = vmatpush2.msra.mxu0 %v961
    %1128 = vmatprep.subr.mxu0 %v958
    %1129 = vmatpush2.msra.mxu0 %v957
    %1130 = vmatprep.subr.mxu0 %v954
    %1131 = vmatpush2.msra.mxu0 %v953
    %1132 = vmatprep.subr.mxu0 %v950
    %1133 = vmatpush2.msra.mxu0 %v949
    %1134 = vmatprep.subr.mxu0 %v946
    %1135 = vmatpush2.msra.mxu0 %v945
    %1136 = vmatprep.subr.mxu0 %v942
    %1137 = vmatpush2.msra.mxu0 %v941
    %1138 = vmatprep.mubr.f32.mxu0 %v33
    %1139 = vmatmul.mubr.f32.gmra.mxu0 %v32
    %v1140 = vpop.f32.mrf.mxu0
    %v1141 = vadd.f32 0.0, %v1140
    %v1142 = vpop.f32.mrf.mxu0
    %v1143 = vadd.f32 0.0, %v1142
    %1144 = vdwg.mxu0
    %v1145 = vlaneseq
    %v1146 = vand.u32 %v1145, 127
    %v1147 = vshra.s32 %v571, 3
    %v1148 = vshra.s32 %v572, 3
    %v1149 = vshra.s32 %v573, 3
    %v1150 = vshra.s32 %v574, 3
    %v1151 = vshra.s32 %v575, 3
    %v1152 = vshra.s32 %v576, 3
    %v1153 = vshra.s32 %v577, 3
    %v1154 = vshra.s32 %v578, 3
    %vm1155 = vcmp.eq.s32.totalorder %v1147, %v1146
    %vm1156 = vcmp.eq.s32.totalorder %v1148, %v1146
    %vm1157 = vcmp.eq.s32.totalorder %v1149, %v1146
    %vm1158 = vcmp.eq.s32.totalorder %v1150, %v1146
    %vm1159 = vcmp.eq.s32.totalorder %v1151, %v1146
    %vm1160 = vcmp.eq.s32.totalorder %v1152, %v1146
    %vm1161 = vcmp.eq.s32.totalorder %v1153, %v1146
    %vm1162 = vcmp.eq.s32.totalorder %v1154, %v1146
    %v1163 = vsel %vm1155, 1, 0
    %v1164 = vsel %vm1156, 1, 0
    %v1165 = vsel %vm1157, 1, 0
    %v1166 = vsel %vm1158, 1, 0
    %v1167 = vsel %vm1159, 1, 0
    %v1168 = vsel %vm1160, 1, 0
    %v1169 = vsel %vm1161, 1, 0
    %v1170 = vsel %vm1162, 1, 0
    %v1171 = vcvt.s32.f32 %v1163
    %v1172 = vcvt.s32.f32 %v1164
    %v1173 = vcvt.s32.f32 %v1165
    %v1174 = vcvt.s32.f32 %v1166
    %v1175 = vcvt.s32.f32 %v1167
    %v1176 = vcvt.s32.f32 %v1168
    %v1177 = vcvt.s32.f32 %v1169
    %v1178 = vcvt.s32.f32 %v1170
    %v1180 = vsel %vm47, %v1171, 0
    %v1183 = vsel %vm47, %v1172, 0
    %v1186 = vsel %vm47, %v1173, 0
    %v1189 = vsel %vm47, %v1174, 0
    %v1192 = vsel %vm47, %v1175, 0
    %v1195 = vsel %vm47, %v1176, 0
    %v1198 = vsel %vm47, %v1177, 0
    %v1201 = vsel %vm47, %v1178, 0
    %1203 = vmatprep.subr.mxu0 0.0
    %1204 = vmatpush1.msra.mxu0 0.0
    %1205 = vmatprep.subr.mxu0 0.0
    %1206 = vmatpush1.msra.mxu0 0.0
    %1207 = vmatprep.subr.mxu0 0.0
    %1208 = vmatpush1.msra.mxu0 0.0
    %1209 = vmatprep.subr.mxu0 0.0
    %1210 = vmatpush1.msra.mxu0 0.0
    %1211 = vmatprep.subr.mxu0 0.0
    %1212 = vmatpush1.msra.mxu0 0.0
    %1213 = vmatprep.subr.mxu0 0.0
    %1214 = vmatpush1.msra.mxu0 0.0
    %1215 = vmatprep.subr.mxu0 0.0
    %1216 = vmatpush1.msra.mxu0 0.0
    %1217 = vmatprep.subr.mxu0 0.0
    %1218 = vmatpush1.msra.mxu0 0.0
    %1219 = vmatprep.subr.mxu0 0.0
    %1220 = vmatpush1.msra.mxu0 0.0
    %1221 = vmatprep.subr.mxu0 0.0
    %1222 = vmatpush1.msra.mxu0 0.0
    %1223 = vmatprep.subr.mxu0 0.0
    %1224 = vmatpush1.msra.mxu0 0.0
    %1225 = vmatprep.subr.mxu0 0.0
    %1226 = vmatpush1.msra.mxu0 0.0
    %1227 = vmatprep.subr.mxu0 0.0
    %1228 = vmatpush1.msra.mxu0 0.0
    %1229 = vmatprep.subr.mxu0 0.0
    %1230 = vmatpush1.msra.mxu0 0.0
    %1231 = vmatprep.subr.mxu0 0.0
    %1232 = vmatpush1.msra.mxu0 0.0
    %1233 = vmatprep.subr.mxu0 %v1072
    %1234 = vmatpush1.msra.mxu0 %v1070
    %1235 = vmatprep.subr.mxu0 0.0
    %1236 = vmatpush2.msra.mxu0 0.0
    %1237 = vmatprep.subr.mxu0 0.0
    %1238 = vmatpush2.msra.mxu0 0.0
    %1239 = vmatprep.subr.mxu0 0.0
    %1240 = vmatpush2.msra.mxu0 0.0
    %1241 = vmatprep.subr.mxu0 0.0
    %1242 = vmatpush2.msra.mxu0 0.0
    %1243 = vmatprep.subr.mxu0 0.0
    %1244 = vmatpush2.msra.mxu0 0.0
    %1245 = vmatprep.subr.mxu0 0.0
    %1246 = vmatpush2.msra.mxu0 0.0
    %1247 = vmatprep.subr.mxu0 0.0
    %1248 = vmatpush2.msra.mxu0 0.0
    %1249 = vmatprep.subr.mxu0 0.0
    %1250 = vmatpush2.msra.mxu0 0.0
    %1251 = vmatprep.subr.mxu0 0.0
    %1252 = vmatpush2.msra.mxu0 0.0
    %1253 = vmatprep.subr.mxu0 0.0
    %1254 = vmatpush2.msra.mxu0 0.0
    %1255 = vmatprep.subr.mxu0 0.0
    %1256 = vmatpush2.msra.mxu0 0.0
    %1257 = vmatprep.subr.mxu0 0.0
    %1258 = vmatpush2.msra.mxu0 0.0
    %1259 = vmatprep.subr.mxu0 0.0
    %1260 = vmatpush2.msra.mxu0 0.0
    %1261 = vmatprep.subr.mxu0 0.0
    %1262 = vmatpush2.msra.mxu0 0.0
    %1263 = vmatprep.subr.mxu0 0.0
    %1264 = vmatpush2.msra.mxu0 0.0
    %1265 = vmatprep.subr.mxu0 0.0
    %1266 = vmatpush2.msra.mxu0 0.0
    %1267 = vmatprep.mubr.f32.mxu0 0.0
    %1268 = vmatmul.mubr.f32.gmra.mxu0 %v1180
    %v1269 = vpop.f32.mrf.mxu0
    %v1270 = vadd.f32 0.0, %v1269
    %v1271 = vpop.f32.mrf.mxu0
    %v1272 = vadd.f32 0.0, %v1271
    %1273 = vmatprep.mubr.f32.mxu0 0.0
    %1274 = vmatmul.mubr.f32.gmra.mxu0 %v1183
    %v1275 = vpop.f32.mrf.mxu0
    %v1276 = vadd.f32 0.0, %v1275
    %v1277 = vpop.f32.mrf.mxu0
    %v1278 = vadd.f32 0.0, %v1277
    %1279 = vmatprep.mubr.f32.mxu0 0.0
    %1280 = vmatmul.mubr.f32.gmra.mxu0 %v1186
    %v1281 = vpop.f32.mrf.mxu0
    %v1282 = vadd.f32 0.0, %v1281
    %v1283 = vpop.f32.mrf.mxu0
    %v1284 = vadd.f32 0.0, %v1283
    %1285 = vmatprep.mubr.f32.mxu0 0.0
    %1286 = vmatmul.mubr.f32.gmra.mxu0 %v1189
    %v1287 = vpop.f32.mrf.mxu0
    %v1288 = vadd.f32 0.0, %v1287
    %v1289 = vpop.f32.mrf.mxu0
    %v1290 = vadd.f32 0.0, %v1289
    %1291 = vmatprep.mubr.f32.mxu0 0.0
    %1292 = vmatmul.mubr.f32.gmra.mxu0 %v1192
    %v1293 = vpop.f32.mrf.mxu0
    %v1294 = vadd.f32 0.0, %v1293
    %v1295 = vpop.f32.mrf.mxu0
    %v1296 = vadd.f32 0.0, %v1295
    %1297 = vmatprep.mubr.f32.mxu0 0.0
    %1298 = vmatmul.mubr.f32.gmra.mxu0 %v1195
    %v1299 = vpop.f32.mrf.mxu0
    %v1300 = vadd.f32 0.0, %v1299
    %v1301 = vpop.f32.mrf.mxu0
    %v1302 = vadd.f32 0.0, %v1301
    %1303 = vmatprep.mubr.f32.mxu0 0.0
    %1304 = vmatmul.mubr.f32.gmra.mxu0 %v1198
    %v1305 = vpop.f32.mrf.mxu0
    %v1306 = vadd.f32 0.0, %v1305
    %v1307 = vpop.f32.mrf.mxu0
    %v1308 = vadd.f32 0.0, %v1307
    %1309 = vmatprep.mubr.f32.mxu0 0.0
    %1310 = vmatmul.mubr.f32.gmra.mxu0 %v1201
    %v1311 = vpop.f32.mrf.mxu0
    %v1312 = vadd.f32 0.0, %v1311
    %v1313 = vpop.f32.mrf.mxu0
    %v1314 = vadd.f32 0.0, %v1313
    %1315 = vdwg.mxu0
    %1316 = vmatprep.subr.mxu0 0.0
    %1317 = vmatpush1.msra.mxu0 0.0
    %1318 = vmatprep.subr.mxu0 0.0
    %1319 = vmatpush1.msra.mxu0 0.0
    %1320 = vmatprep.subr.mxu0 0.0
    %1321 = vmatpush1.msra.mxu0 0.0
    %1322 = vmatprep.subr.mxu0 0.0
    %1323 = vmatpush1.msra.mxu0 0.0
    %1324 = vmatprep.subr.mxu0 0.0
    %1325 = vmatpush1.msra.mxu0 0.0
    %1326 = vmatprep.subr.mxu0 0.0
    %1327 = vmatpush1.msra.mxu0 0.0
    %1328 = vmatprep.subr.mxu0 0.0
    %1329 = vmatpush1.msra.mxu0 0.0
    %1330 = vmatprep.subr.mxu0 0.0
    %1331 = vmatpush1.msra.mxu0 0.0
    %1332 = vmatprep.subr.mxu0 0.0
    %1333 = vmatpush1.msra.mxu0 0.0
    %1334 = vmatprep.subr.mxu0 0.0
    %1335 = vmatpush1.msra.mxu0 0.0
    %1336 = vmatprep.subr.mxu0 0.0
    %1337 = vmatpush1.msra.mxu0 0.0
    %1338 = vmatprep.subr.mxu0 0.0
    %1339 = vmatpush1.msra.mxu0 0.0
    %1340 = vmatprep.subr.mxu0 0.0
    %1341 = vmatpush1.msra.mxu0 0.0
    %1342 = vmatprep.subr.mxu0 0.0
    %1343 = vmatpush1.msra.mxu0 0.0
    %1344 = vmatprep.subr.mxu0 0.0
    %1345 = vmatpush1.msra.mxu0 0.0
    %1346 = vmatprep.subr.mxu0 %v1143
    %1347 = vmatpush1.msra.mxu0 %v1141
    %1348 = vmatprep.subr.mxu0 0.0
    %1349 = vmatpush2.msra.mxu0 0.0
    %1350 = vmatprep.subr.mxu0 0.0
    %1351 = vmatpush2.msra.mxu0 0.0
    %1352 = vmatprep.subr.mxu0 0.0
    %1353 = vmatpush2.msra.mxu0 0.0
    %1354 = vmatprep.subr.mxu0 0.0
    %1355 = vmatpush2.msra.mxu0 0.0
    %1356 = vmatprep.subr.mxu0 0.0
    %1357 = vmatpush2.msra.mxu0 0.0
    %1358 = vmatprep.subr.mxu0 0.0
    %1359 = vmatpush2.msra.mxu0 0.0
    %1360 = vmatprep.subr.mxu0 0.0
    %1361 = vmatpush2.msra.mxu0 0.0
    %1362 = vmatprep.subr.mxu0 0.0
    %1363 = vmatpush2.msra.mxu0 0.0
    %1364 = vmatprep.subr.mxu0 0.0
    %1365 = vmatpush2.msra.mxu0 0.0
    %1366 = vmatprep.subr.mxu0 0.0
    %1367 = vmatpush2.msra.mxu0 0.0
    %1368 = vmatprep.subr.mxu0 0.0
    %1369 = vmatpush2.msra.mxu0 0.0
    %1370 = vmatprep.subr.mxu0 0.0
    %1371 = vmatpush2.msra.mxu0 0.0
    %1372 = vmatprep.subr.mxu0 0.0
    %1373 = vmatpush2.msra.mxu0 0.0
    %1374 = vmatprep.subr.mxu0 0.0
    %1375 = vmatpush2.msra.mxu0 0.0
    %1376 = vmatprep.subr.mxu0 0.0
    %1377 = vmatpush2.msra.mxu0 0.0
    %1378 = vmatprep.subr.mxu0 0.0
    %1379 = vmatpush2.msra.mxu0 0.0
    %1380 = vmatprep.mubr.f32.mxu0 0.0
    %1381 = vmatmul.mubr.f32.gmra.mxu0 %v1180
    %v1382 = vpop.f32.mrf.mxu0
    %v1383 = vadd.f32 0.0, %v1382
    %v1384 = vpop.f32.mrf.mxu0
    %v1385 = vadd.f32 0.0, %v1384
    %1386 = vmatprep.mubr.f32.mxu0 0.0
    %1387 = vmatmul.mubr.f32.gmra.mxu0 %v1183
    %v1388 = vpop.f32.mrf.mxu0
    %v1389 = vadd.f32 0.0, %v1388
    %v1390 = vpop.f32.mrf.mxu0
    %v1391 = vadd.f32 0.0, %v1390
    %1392 = vmatprep.mubr.f32.mxu0 0.0
    %1393 = vmatmul.mubr.f32.gmra.mxu0 %v1186
    %v1394 = vpop.f32.mrf.mxu0
    %v1395 = vadd.f32 0.0, %v1394
    %v1396 = vpop.f32.mrf.mxu0
    %v1397 = vadd.f32 0.0, %v1396
    %1398 = vmatprep.mubr.f32.mxu0 0.0
    %1399 = vmatmul.mubr.f32.gmra.mxu0 %v1189
    %v1400 = vpop.f32.mrf.mxu0
    %v1401 = vadd.f32 0.0, %v1400
    %v1402 = vpop.f32.mrf.mxu0
    %v1403 = vadd.f32 0.0, %v1402
    %1404 = vmatprep.mubr.f32.mxu0 0.0
    %1405 = vmatmul.mubr.f32.gmra.mxu0 %v1192
    %v1406 = vpop.f32.mrf.mxu0
    %v1407 = vadd.f32 0.0, %v1406
    %v1408 = vpop.f32.mrf.mxu0
    %v1409 = vadd.f32 0.0, %v1408
    %1410 = vmatprep.mubr.f32.mxu0 0.0
    %1411 = vmatmul.mubr.f32.gmra.mxu0 %v1195
    %v1412 = vpop.f32.mrf.mxu0
    %v1413 = vadd.f32 0.0, %v1412
    %v1414 = vpop.f32.mrf.mxu0
    %v1415 = vadd.f32 0.0, %v1414
    %1416 = vmatprep.mubr.f32.mxu0 0.0
    %1417 = vmatmul.mubr.f32.gmra.mxu0 %v1198
    %v1418 = vpop.f32.mrf.mxu0
    %v1419 = vadd.f32 0.0, %v1418
    %v1420 = vpop.f32.mrf.mxu0
    %v1421 = vadd.f32 0.0, %v1420
    %1422 = vmatprep.mubr.f32.mxu0 0.0
    %1423 = vmatmul.mubr.f32.gmra.mxu0 %v1201
    %v1424 = vpop.f32.mrf.mxu0
    %v1425 = vadd.f32 0.0, %v1424
    %v1426 = vpop.f32.mrf.mxu0
    %v1427 = vadd.f32 0.0, %v1426
    %1428 = vdwg.mxu0
    %v1429 = vand.u32 %v1146, 7
    %vm1430 = vcmp.eq.s32.totalorder %v1429, %v571
    %v1431 = vsel %vm1430, 1, 0
    %v1432 = vcvt.s32.f32 %v1431
    %v1433 = vmul.f32 %v1270, %v537
    %v1434 = vmul.f32 %v1272, %v538
    %v1435 = vmul.f32 %v1383, %v539
    %v1436 = vmul.f32 %v1385, %v540
    %v1437 = vmul.f32 %v1276, %v541
    %v1438 = vmul.f32 %v1278, %v542
    %v1439 = vmul.f32 %v1389, %v543
    %v1440 = vmul.f32 %v1391, %v544
    %v1441 = vmul.f32 %v1282, %v545
    %v1442 = vmul.f32 %v1284, %v546
    %v1443 = vmul.f32 %v1395, %v547
    %v1444 = vmul.f32 %v1397, %v548
    %v1445 = vmul.f32 %v1288, %v549
    %v1446 = vmul.f32 %v1290, %v550
    %v1447 = vmul.f32 %v1401, %v551
    %v1448 = vmul.f32 %v1403, %v552
    %v1449 = vmul.f32 %v1294, %v553
    %v1450 = vmul.f32 %v1296, %v554
    %v1451 = vmul.f32 %v1407, %v555
    %v1452 = vmul.f32 %v1409, %v556
    %v1453 = vmul.f32 %v1300, %v557
    %v1454 = vmul.f32 %v1302, %v558
    %v1455 = vmul.f32 %v1413, %v559
    %v1456 = vmul.f32 %v1415, %v560
    %v1457 = vmul.f32 %v1306, %v561
    %v1458 = vmul.f32 %v1308, %v562
    %v1459 = vmul.f32 %v1419, %v563
    %v1460 = vmul.f32 %v1421, %v564
    %v1461 = vmul.f32 %v1312, %v565
    %v1462 = vmul.f32 %v1314, %v566
    %v1463 = vmul.f32 %v1425, %v567
    %v1464 = vmul.f32 %v1427, %v568
    %vm1465 = vcmask 523264
    %v1467 = vsel %vm1465, %v1432, 0
    %1469 = vmatprep.subr.mxu0 0.0
    %1470 = vmatpush1.msra.mxu0 0.0
    %1471 = vmatprep.subr.mxu0 0.0
    %1472 = vmatpush1.msra.mxu0 0.0
    %1473 = vmatprep.subr.mxu0 0.0
    %1474 = vmatpush1.msra.mxu0 0.0
    %1475 = vmatprep.subr.mxu0 0.0
    %1476 = vmatpush1.msra.mxu0 0.0
    %1477 = vmatprep.subr.mxu0 0.0
    %1478 = vmatpush1.msra.mxu0 0.0
    %1479 = vmatprep.subr.mxu0 0.0
    %1480 = vmatpush1.msra.mxu0 0.0
    %1481 = vmatprep.subr.mxu0 0.0
    %1482 = vmatpush1.msra.mxu0 0.0
    %1483 = vmatprep.subr.mxu0 0.0
    %1484 = vmatpush1.msra.mxu0 0.0
    %1485 = vmatprep.subr.mxu0 %v1462
    %1486 = vmatpush1.msra.mxu0 %v1461
    %1487 = vmatprep.subr.mxu0 %v1458
    %1488 = vmatpush1.msra.mxu0 %v1457
    %1489 = vmatprep.subr.mxu0 %v1454
    %1490 = vmatpush1.msra.mxu0 %v1453
    %1491 = vmatprep.subr.mxu0 %v1450
    %1492 = vmatpush1.msra.mxu0 %v1449
    %1493 = vmatprep.subr.mxu0 %v1446
    %1494 = vmatpush1.msra.mxu0 %v1445
    %1495 = vmatprep.subr.mxu0 %v1442
    %1496 = vmatpush1.msra.mxu0 %v1441
    %1497 = vmatprep.subr.mxu0 %v1438
    %1498 = vmatpush1.msra.mxu0 %v1437
    %1499 = vmatprep.subr.mxu0 %v1434
    %1500 = vmatpush1.msra.mxu0 %v1433
    %1501 = vmatprep.subr.mxu0 0.0
    %1502 = vmatpush2.msra.mxu0 0.0
    %1503 = vmatprep.subr.mxu0 0.0
    %1504 = vmatpush2.msra.mxu0 0.0
    %1505 = vmatprep.subr.mxu0 0.0
    %1506 = vmatpush2.msra.mxu0 0.0
    %1507 = vmatprep.subr.mxu0 0.0
    %1508 = vmatpush2.msra.mxu0 0.0
    %1509 = vmatprep.subr.mxu0 0.0
    %1510 = vmatpush2.msra.mxu0 0.0
    %1511 = vmatprep.subr.mxu0 0.0
    %1512 = vmatpush2.msra.mxu0 0.0
    %1513 = vmatprep.subr.mxu0 0.0
    %1514 = vmatpush2.msra.mxu0 0.0
    %1515 = vmatprep.subr.mxu0 0.0
    %1516 = vmatpush2.msra.mxu0 0.0
    %1517 = vmatprep.subr.mxu0 0.0
    %1518 = vmatpush2.msra.mxu0 0.0
    %1519 = vmatprep.subr.mxu0 0.0
    %1520 = vmatpush2.msra.mxu0 0.0
    %1521 = vmatprep.subr.mxu0 0.0
    %1522 = vmatpush2.msra.mxu0 0.0
    %1523 = vmatprep.subr.mxu0 0.0
    %1524 = vmatpush2.msra.mxu0 0.0
    %1525 = vmatprep.subr.mxu0 0.0
    %1526 = vmatpush2.msra.mxu0 0.0
    %1527 = vmatprep.subr.mxu0 0.0
    %1528 = vmatpush2.msra.mxu0 0.0
    %1529 = vmatprep.subr.mxu0 0.0
    %1530 = vmatpush2.msra.mxu0 0.0
    %1531 = vmatprep.subr.mxu0 0.0
    %1532 = vmatpush2.msra.mxu0 0.0
    %1533 = vmatprep.mubr.f32.mxu0 0.0
    %1534 = vmatmul.mubr.f32.gmra.mxu0 %v1467
    %v1535 = vpop.f32.mrf.mxu0
    %v1536 = vadd.f32 0.0, %v1535
    %v1537 = vpop.f32.mrf.mxu0
    %v1538 = vadd.f32 0.0, %v1537
    %1539 = vdwg.mxu0
    %1540 = vmatprep.subr.mxu0 0.0
    %1541 = vmatpush1.msra.mxu0 0.0
    %1542 = vmatprep.subr.mxu0 0.0
    %1543 = vmatpush1.msra.mxu0 0.0
    %1544 = vmatprep.subr.mxu0 0.0
    %1545 = vmatpush1.msra.mxu0 0.0
    %1546 = vmatprep.subr.mxu0 0.0
    %1547 = vmatpush1.msra.mxu0 0.0
    %1548 = vmatprep.subr.mxu0 0.0
    %1549 = vmatpush1.msra.mxu0 0.0
    %1550 = vmatprep.subr.mxu0 0.0
    %1551 = vmatpush1.msra.mxu0 0.0
    %1552 = vmatprep.subr.mxu0 0.0
    %1553 = vmatpush1.msra.mxu0 0.0
    %1554 = vmatprep.subr.mxu0 0.0
    %1555 = vmatpush1.msra.mxu0 0.0
    %1556 = vmatprep.subr.mxu0 %v1464
    %1557 = vmatpush1.msra.mxu0 %v1463
    %1558 = vmatprep.subr.mxu0 %v1460
    %1559 = vmatpush1.msra.mxu0 %v1459
    %1560 = vmatprep.subr.mxu0 %v1456
    %1561 = vmatpush1.msra.mxu0 %v1455
    %1562 = vmatprep.subr.mxu0 %v1452
    %1563 = vmatpush1.msra.mxu0 %v1451
    %1564 = vmatprep.subr.mxu0 %v1448
    %1565 = vmatpush1.msra.mxu0 %v1447
    %1566 = vmatprep.subr.mxu0 %v1444
    %1567 = vmatpush1.msra.mxu0 %v1443
    %1568 = vmatprep.subr.mxu0 %v1440
    %1569 = vmatpush1.msra.mxu0 %v1439
    %1570 = vmatprep.subr.mxu0 %v1436
    %1571 = vmatpush1.msra.mxu0 %v1435
    %1572 = vmatprep.subr.mxu0 0.0
    %1573 = vmatpush2.msra.mxu0 0.0
    %1574 = vmatprep.subr.mxu0 0.0
    %1575 = vmatpush2.msra.mxu0 0.0
    %1576 = vmatprep.subr.mxu0 0.0
    %1577 = vmatpush2.msra.mxu0 0.0
    %1578 = vmatprep.subr.mxu0 0.0
    %1579 = vmatpush2.msra.mxu0 0.0
    %1580 = vmatprep.subr.mxu0 0.0
    %1581 = vmatpush2.msra.mxu0 0.0
    %1582 = vmatprep.subr.mxu0 0.0
    %1583 = vmatpush2.msra.mxu0 0.0
    %1584 = vmatprep.subr.mxu0 0.0
    %1585 = vmatpush2.msra.mxu0 0.0
    %1586 = vmatprep.subr.mxu0 0.0
    %1587 = vmatpush2.msra.mxu0 0.0
    %1588 = vmatprep.subr.mxu0 0.0
    %1589 = vmatpush2.msra.mxu0 0.0
    %1590 = vmatprep.subr.mxu0 0.0
    %1591 = vmatpush2.msra.mxu0 0.0
    %1592 = vmatprep.subr.mxu0 0.0
    %1593 = vmatpush2.msra.mxu0 0.0
    %1594 = vmatprep.subr.mxu0 0.0
    %1595 = vmatpush2.msra.mxu0 0.0
    %1596 = vmatprep.subr.mxu0 0.0
    %1597 = vmatpush2.msra.mxu0 0.0
    %1598 = vmatprep.subr.mxu0 0.0
    %1599 = vmatpush2.msra.mxu0 0.0
    %1600 = vmatprep.subr.mxu0 0.0
    %1601 = vmatpush2.msra.mxu0 0.0
    %1602 = vmatprep.subr.mxu0 0.0
    %1603 = vmatpush2.msra.mxu0 0.0
    %1604 = vmatprep.mubr.f32.mxu0 0.0
    %1605 = vmatmul.mubr.f32.gmra.mxu0 %v1467
    %v1606 = vpop.f32.mrf.mxu0
    %v1607 = vadd.f32 0.0, %v1606
    %v1608 = vpop.f32.mrf.mxu0
    %v1609 = vadd.f32 0.0, %v1608
    %1610 = vdwg.mxu0
    %v1611 = vand.u32 %v571, 7
    %v1612 = vand.u32 %v572, 7
    %v1613 = vand.u32 %v573, 7
    %v1614 = vand.u32 %v574, 7
    %v1615 = vand.u32 %v575, 7
    %v1616 = vand.u32 %v576, 7
    %v1617 = vand.u32 %v577, 7
    %v1618 = vand.u32 %v578, 7
    %v1619 = vand.u32 %v579, 7
    %v1620 = vand.u32 %v580, 7
    %v1621 = vand.u32 %v581, 7
    %v1622 = vand.u32 %v582, 7
    %v1623 = vand.u32 %v583, 7
    %v1624 = vand.u32 %v584, 7
    %v1625 = vand.u32 %v585, 7
    %v1626 = vand.u32 %v586, 7
    %vm1627 = vcmp.eq.s32.totalorder %v1611, %v1146
    %vm1628 = vcmp.eq.s32.totalorder %v1612, %v1146
    %vm1629 = vcmp.eq.s32.totalorder %v1613, %v1146
    %vm1630 = vcmp.eq.s32.totalorder %v1614, %v1146
    %vm1631 = vcmp.eq.s32.totalorder %v1615, %v1146
    %vm1632 = vcmp.eq.s32.totalorder %v1616, %v1146
    %vm1633 = vcmp.eq.s32.totalorder %v1617, %v1146
    %vm1634 = vcmp.eq.s32.totalorder %v1618, %v1146
    %vm1635 = vcmp.eq.s32.totalorder %v1619, %v1146
    %vm1636 = vcmp.eq.s32.totalorder %v1620, %v1146
    %vm1637 = vcmp.eq.s32.totalorder %v1621, %v1146
    %vm1638 = vcmp.eq.s32.totalorder %v1622, %v1146
    %vm1639 = vcmp.eq.s32.totalorder %v1623, %v1146
    %vm1640 = vcmp.eq.s32.totalorder %v1624, %v1146
    %vm1641 = vcmp.eq.s32.totalorder %v1625, %v1146
    %vm1642 = vcmp.eq.s32.totalorder %v1626, %v1146
    %v1643 = vsel %vm1627, 1, 0
    %v1644 = vsel %vm1628, 1, 0
    %v1645 = vsel %vm1629, 1, 0
    %v1646 = vsel %vm1630, 1, 0
    %v1647 = vsel %vm1631, 1, 0
    %v1648 = vsel %vm1632, 1, 0
    %v1649 = vsel %vm1633, 1, 0
    %v1650 = vsel %vm1634, 1, 0
    %v1651 = vsel %vm1635, 1, 0
    %v1652 = vsel %vm1636, 1, 0
    %v1653 = vsel %vm1637, 1, 0
    %v1654 = vsel %vm1638, 1, 0
    %v1655 = vsel %vm1639, 1, 0
    %v1656 = vsel %vm1640, 1, 0
    %v1657 = vsel %vm1641, 1, 0
    %v1658 = vsel %vm1642, 1, 0
    %v1659 = vcvt.s32.f32 %v1643
    %v1660 = vcvt.s32.f32 %v1644
    %v1661 = vcvt.s32.f32 %v1645
    %v1662 = vcvt.s32.f32 %v1646
    %v1663 = vcvt.s32.f32 %v1647
    %v1664 = vcvt.s32.f32 %v1648
    %v1665 = vcvt.s32.f32 %v1649
    %v1666 = vcvt.s32.f32 %v1650
    %v1667 = vcvt.s32.f32 %v1651
    %v1668 = vcvt.s32.f32 %v1652
    %v1669 = vcvt.s32.f32 %v1653
    %v1670 = vcvt.s32.f32 %v1654
    %v1671 = vcvt.s32.f32 %v1655
    %v1672 = vcvt.s32.f32 %v1656
    %v1673 = vcvt.s32.f32 %v1657
    %v1674 = vcvt.s32.f32 %v1658
    %v1676 = vsel %vm47, %v1659, 0
    %v1679 = vsel %vm47, %v1660, 0
    %v1682 = vsel %vm47, %v1661, 0
    %v1685 = vsel %vm47, %v1662, 0
    %v1688 = vsel %vm47, %v1663, 0
    %v1691 = vsel %vm47, %v1664, 0
    %v1694 = vsel %vm47, %v1665, 0
    %v1697 = vsel %vm47, %v1666, 0
    %v1700 = vsel %vm47, %v1667, 0
    %v1703 = vsel %vm47, %v1668, 0
    %v1706 = vsel %vm47, %v1669, 0
    %v1709 = vsel %vm47, %v1670, 0
    %v1712 = vsel %vm47, %v1671, 0
    %v1715 = vsel %vm47, %v1672, 0
    %v1718 = vsel %vm47, %v1673, 0
    %v1721 = vsel %vm47, %v1674, 0
    %1723 = vmatprep.subr.mxu0 0.0
    %1724 = vmatpush1.msra.mxu0 0.0
    %1725 = vmatprep.subr.mxu0 0.0
    %1726 = vmatpush1.msra.mxu0 0.0
    %1727 = vmatprep.subr.mxu0 0.0
    %1728 = vmatpush1.msra.mxu0 0.0
    %1729 = vmatprep.subr.mxu0 0.0
    %1730 = vmatpush1.msra.mxu0 0.0
    %1731 = vmatprep.subr.mxu0 0.0
    %1732 = vmatpush1.msra.mxu0 0.0
    %1733 = vmatprep.subr.mxu0 0.0
    %1734 = vmatpush1.msra.mxu0 0.0
    %1735 = vmatprep.subr.mxu0 0.0
    %1736 = vmatpush1.msra.mxu0 0.0
    %1737 = vmatprep.subr.mxu0 0.0
    %1738 = vmatpush1.msra.mxu0 0.0
    %1739 = vmatprep.subr.mxu0 0.0
    %1740 = vmatpush1.msra.mxu0 0.0
    %1741 = vmatprep.subr.mxu0 0.0
    %1742 = vmatpush1.msra.mxu0 0.0
    %1743 = vmatprep.subr.mxu0 0.0
    %1744 = vmatpush1.msra.mxu0 0.0
    %1745 = vmatprep.subr.mxu0 0.0
    %1746 = vmatpush1.msra.mxu0 0.0
    %1747 = vmatprep.subr.mxu0 0.0
    %1748 = vmatpush1.msra.mxu0 0.0
    %1749 = vmatprep.subr.mxu0 0.0
    %1750 = vmatpush1.msra.mxu0 0.0
    %1751 = vmatprep.subr.mxu0 0.0
    %1752 = vmatpush1.msra.mxu0 0.0
    %1753 = vmatprep.subr.mxu0 %v1538
    %1754 = vmatpush1.msra.mxu0 %v1536
    %1755 = vmatprep.subr.mxu0 0.0
    %1756 = vmatpush2.msra.mxu0 0.0
    %1757 = vmatprep.subr.mxu0 0.0
    %1758 = vmatpush2.msra.mxu0 0.0
    %1759 = vmatprep.subr.mxu0 0.0
    %1760 = vmatpush2.msra.mxu0 0.0
    %1761 = vmatprep.subr.mxu0 0.0
    %1762 = vmatpush2.msra.mxu0 0.0
    %1763 = vmatprep.subr.mxu0 0.0
    %1764 = vmatpush2.msra.mxu0 0.0
    %1765 = vmatprep.subr.mxu0 0.0
    %1766 = vmatpush2.msra.mxu0 0.0
    %1767 = vmatprep.subr.mxu0 0.0
    %1768 = vmatpush2.msra.mxu0 0.0
    %1769 = vmatprep.subr.mxu0 0.0
    %1770 = vmatpush2.msra.mxu0 0.0
    %1771 = vmatprep.subr.mxu0 0.0
    %1772 = vmatpush2.msra.mxu0 0.0
    %1773 = vmatprep.subr.mxu0 0.0
    %1774 = vmatpush2.msra.mxu0 0.0
    %1775 = vmatprep.subr.mxu0 0.0
    %1776 = vmatpush2.msra.mxu0 0.0
    %1777 = vmatprep.subr.mxu0 0.0
    %1778 = vmatpush2.msra.mxu0 0.0
    %1779 = vmatprep.subr.mxu0 0.0
    %1780 = vmatpush2.msra.mxu0 0.0
    %1781 = vmatprep.subr.mxu0 0.0
    %1782 = vmatpush2.msra.mxu0 0.0
    %1783 = vmatprep.subr.mxu0 0.0
    %1784 = vmatpush2.msra.mxu0 0.0
    %1785 = vmatprep.subr.mxu0 0.0
    %1786 = vmatpush2.msra.mxu0 0.0
    %1787 = vmatprep.mubr.f32.mxu0 0.0
    %1788 = vmatmul.mubr.f32.gmra.mxu0 %v1676
    %v1789 = vpop.f32.mrf.mxu0
    %v1790 = vadd.f32 0.0, %v1789
    %v1791 = vpop.f32.mrf.mxu0
    %v1792 = vadd.f32 0.0, %v1791
    %1793 = vmatprep.mubr.f32.mxu0 0.0
    %1794 = vmatmul.mubr.f32.gmra.mxu0 %v1679
    %v1795 = vpop.f32.mrf.mxu0
    %v1796 = vadd.f32 0.0, %v1795
    %v1797 = vpop.f32.mrf.mxu0
    %v1798 = vadd.f32 0.0, %v1797
    %1799 = vmatprep.mubr.f32.mxu0 0.0
    %1800 = vmatmul.mubr.f32.gmra.mxu0 %v1682
    %v1801 = vpop.f32.mrf.mxu0
    %v1802 = vadd.f32 0.0, %v1801
    %v1803 = vpop.f32.mrf.mxu0
    %v1804 = vadd.f32 0.0, %v1803
    %1805 = vmatprep.mubr.f32.mxu0 0.0
    %1806 = vmatmul.mubr.f32.gmra.mxu0 %v1685
    %v1807 = vpop.f32.mrf.mxu0
    %v1808 = vadd.f32 0.0, %v1807
    %v1809 = vpop.f32.mrf.mxu0
    %v1810 = vadd.f32 0.0, %v1809
    %1811 = vmatprep.mubr.f32.mxu0 0.0
    %1812 = vmatmul.mubr.f32.gmra.mxu0 %v1688
    %v1813 = vpop.f32.mrf.mxu0
    %v1814 = vadd.f32 0.0, %v1813
    %v1815 = vpop.f32.mrf.mxu0
    %v1816 = vadd.f32 0.0, %v1815
    %1817 = vmatprep.mubr.f32.mxu0 0.0
    %1818 = vmatmul.mubr.f32.gmra.mxu0 %v1691
    %v1819 = vpop.f32.mrf.mxu0
    %v1820 = vadd.f32 0.0, %v1819
    %v1821 = vpop.f32.mrf.mxu0
    %v1822 = vadd.f32 0.0, %v1821
    %1823 = vmatprep.mubr.f32.mxu0 0.0
    %1824 = vmatmul.mubr.f32.gmra.mxu0 %v1694
    %v1825 = vpop.f32.mrf.mxu0
    %v1826 = vadd.f32 0.0, %v1825
    %v1827 = vpop.f32.mrf.mxu0
    %v1828 = vadd.f32 0.0, %v1827
    %1829 = vmatprep.mubr.f32.mxu0 0.0
    %1830 = vmatmul.mubr.f32.gmra.mxu0 %v1697
    %v1831 = vpop.f32.mrf.mxu0
    %v1832 = vadd.f32 0.0, %v1831
    %v1833 = vpop.f32.mrf.mxu0
    %v1834 = vadd.f32 0.0, %v1833
    %1835 = vmatprep.mubr.f32.mxu0 0.0
    %1836 = vmatmul.mubr.f32.gmra.mxu0 %v1700
    %v1837 = vpop.f32.mrf.mxu0
    %v1838 = vadd.f32 0.0, %v1837
    %v1839 = vpop.f32.mrf.mxu0
    %v1840 = vadd.f32 0.0, %v1839
    %1841 = vmatprep.mubr.f32.mxu0 0.0
    %1842 = vmatmul.mubr.f32.gmra.mxu0 %v1703
    %v1843 = vpop.f32.mrf.mxu0
    %v1844 = vadd.f32 0.0, %v1843
    %v1845 = vpop.f32.mrf.mxu0
    %v1846 = vadd.f32 0.0, %v1845
    %1847 = vmatprep.mubr.f32.mxu0 0.0
    %1848 = vmatmul.mubr.f32.gmra.mxu0 %v1706
    %v1849 = vpop.f32.mrf.mxu0
    %v1850 = vadd.f32 0.0, %v1849
    %v1851 = vpop.f32.mrf.mxu0
    %v1852 = vadd.f32 0.0, %v1851
    %1853 = vmatprep.mubr.f32.mxu0 0.0
    %1854 = vmatmul.mubr.f32.gmra.mxu0 %v1709
    %v1855 = vpop.f32.mrf.mxu0
    %v1856 = vadd.f32 0.0, %v1855
    %v1857 = vpop.f32.mrf.mxu0
    %v1858 = vadd.f32 0.0, %v1857
    %1859 = vmatprep.mubr.f32.mxu0 0.0
    %1860 = vmatmul.mubr.f32.gmra.mxu0 %v1712
    %v1861 = vpop.f32.mrf.mxu0
    %v1862 = vadd.f32 0.0, %v1861
    %v1863 = vpop.f32.mrf.mxu0
    %v1864 = vadd.f32 0.0, %v1863
    %1865 = vmatprep.mubr.f32.mxu0 0.0
    %1866 = vmatmul.mubr.f32.gmra.mxu0 %v1715
    %v1867 = vpop.f32.mrf.mxu0
    %v1868 = vadd.f32 0.0, %v1867
    %v1869 = vpop.f32.mrf.mxu0
    %v1870 = vadd.f32 0.0, %v1869
    %1871 = vmatprep.mubr.f32.mxu0 0.0
    %1872 = vmatmul.mubr.f32.gmra.mxu0 %v1718
    %v1873 = vpop.f32.mrf.mxu0
    %v1874 = vadd.f32 0.0, %v1873
    %v1875 = vpop.f32.mrf.mxu0
    %v1876 = vadd.f32 0.0, %v1875
    %1877 = vmatprep.mubr.f32.mxu0 0.0
    %1878 = vmatmul.mubr.f32.gmra.mxu0 %v1721
    %v1879 = vpop.f32.mrf.mxu0
    %v1880 = vadd.f32 0.0, %v1879
    %v1881 = vpop.f32.mrf.mxu0
    %v1882 = vadd.f32 0.0, %v1881
    %1883 = vdwg.mxu0
    %1884 = vmatprep.subr.mxu0 0.0
    %1885 = vmatpush1.msra.mxu0 0.0
    %1886 = vmatprep.subr.mxu0 0.0
    %1887 = vmatpush1.msra.mxu0 0.0
    %1888 = vmatprep.subr.mxu0 0.0
    %1889 = vmatpush1.msra.mxu0 0.0
    %1890 = vmatprep.subr.mxu0 0.0
    %1891 = vmatpush1.msra.mxu0 0.0
    %1892 = vmatprep.subr.mxu0 0.0
    %1893 = vmatpush1.msra.mxu0 0.0
    %1894 = vmatprep.subr.mxu0 0.0
    %1895 = vmatpush1.msra.mxu0 0.0
    %1896 = vmatprep.subr.mxu0 0.0
    %1897 = vmatpush1.msra.mxu0 0.0
    %1898 = vmatprep.subr.mxu0 0.0
    %1899 = vmatpush1.msra.mxu0 0.0
    %1900 = vmatprep.subr.mxu0 0.0
    %1901 = vmatpush1.msra.mxu0 0.0
    %1902 = vmatprep.subr.mxu0 0.0
    %1903 = vmatpush1.msra.mxu0 0.0
    %1904 = vmatprep.subr.mxu0 0.0
    %1905 = vmatpush1.msra.mxu0 0.0
    %1906 = vmatprep.subr.mxu0 0.0
    %1907 = vmatpush1.msra.mxu0 0.0
    %1908 = vmatprep.subr.mxu0 0.0
    %1909 = vmatpush1.msra.mxu0 0.0
    %1910 = vmatprep.subr.mxu0 0.0
    %1911 = vmatpush1.msra.mxu0 0.0
    %1912 = vmatprep.subr.mxu0 0.0
    %1913 = vmatpush1.msra.mxu0 0.0
    %1914 = vmatprep.subr.mxu0 %v1609
    %1915 = vmatpush1.msra.mxu0 %v1607
    %1916 = vmatprep.subr.mxu0 0.0
    %1917 = vmatpush2.msra.mxu0 0.0
    %1918 = vmatprep.subr.mxu0 0.0
    %1919 = vmatpush2.msra.mxu0 0.0
    %1920 = vmatprep.subr.mxu0 0.0
    %1921 = vmatpush2.msra.mxu0 0.0
    %1922 = vmatprep.subr.mxu0 0.0
    %1923 = vmatpush2.msra.mxu0 0.0
    %1924 = vmatprep.subr.mxu0 0.0
    %1925 = vmatpush2.msra.mxu0 0.0
    %1926 = vmatprep.subr.mxu0 0.0
    %1927 = vmatpush2.msra.mxu0 0.0
    %1928 = vmatprep.subr.mxu0 0.0
    %1929 = vmatpush2.msra.mxu0 0.0
    %1930 = vmatprep.subr.mxu0 0.0
    %1931 = vmatpush2.msra.mxu0 0.0
    %1932 = vmatprep.subr.mxu0 0.0
    %1933 = vmatpush2.msra.mxu0 0.0
    %1934 = vmatprep.subr.mxu0 0.0
    %1935 = vmatpush2.msra.mxu0 0.0
    %1936 = vmatprep.subr.mxu0 0.0
    %1937 = vmatpush2.msra.mxu0 0.0
    %1938 = vmatprep.subr.mxu0 0.0
    %1939 = vmatpush2.msra.mxu0 0.0
    %1940 = vmatprep.subr.mxu0 0.0
    %1941 = vmatpush2.msra.mxu0 0.0
    %1942 = vmatprep.subr.mxu0 0.0
    %1943 = vmatpush2.msra.mxu0 0.0
    %1944 = vmatprep.subr.mxu0 0.0
    %1945 = vmatpush2.msra.mxu0 0.0
    %1946 = vmatprep.subr.mxu0 0.0
    %1947 = vmatpush2.msra.mxu0 0.0
    %1948 = vmatprep.mubr.f32.mxu0 0.0
    %1949 = vmatmul.mubr.f32.gmra.mxu0 %v1676
    %v1950 = vpop.f32.mrf.mxu0
    %v1951 = vadd.f32 0.0, %v1950
    %v1952 = vpop.f32.mrf.mxu0
    %v1953 = vadd.f32 0.0, %v1952
    %1954 = vmatprep.mubr.f32.mxu0 0.0
    %1955 = vmatmul.mubr.f32.gmra.mxu0 %v1679
    %v1956 = vpop.f32.mrf.mxu0
    %v1957 = vadd.f32 0.0, %v1956
    %v1958 = vpop.f32.mrf.mxu0
    %v1959 = vadd.f32 0.0, %v1958
    %1960 = vmatprep.mubr.f32.mxu0 0.0
    %1961 = vmatmul.mubr.f32.gmra.mxu0 %v1682
    %v1962 = vpop.f32.mrf.mxu0
    %v1963 = vadd.f32 0.0, %v1962
    %v1964 = vpop.f32.mrf.mxu0
    %v1965 = vadd.f32 0.0, %v1964
    %1966 = vmatprep.mubr.f32.mxu0 0.0
    %1967 = vmatmul.mubr.f32.gmra.mxu0 %v1685
    %v1968 = vpop.f32.mrf.mxu0
    %v1969 = vadd.f32 0.0, %v1968
    %v1970 = vpop.f32.mrf.mxu0
    %v1971 = vadd.f32 0.0, %v1970
    %1972 = vmatprep.mubr.f32.mxu0 0.0
    %1973 = vmatmul.mubr.f32.gmra.mxu0 %v1688
    %v1974 = vpop.f32.mrf.mxu0
    %v1975 = vadd.f32 0.0, %v1974
    %v1976 = vpop.f32.mrf.mxu0
    %v1977 = vadd.f32 0.0, %v1976
    %1978 = vmatprep.mubr.f32.mxu0 0.0
    %1979 = vmatmul.mubr.f32.gmra.mxu0 %v1691
    %v1980 = vpop.f32.mrf.mxu0
    %v1981 = vadd.f32 0.0, %v1980
    %v1982 = vpop.f32.mrf.mxu0
    %v1983 = vadd.f32 0.0, %v1982
    %1984 = vmatprep.mubr.f32.mxu0 0.0
    %1985 = vmatmul.mubr.f32.gmra.mxu0 %v1694
    %v1986 = vpop.f32.mrf.mxu0
    %v1987 = vadd.f32 0.0, %v1986
    %v1988 = vpop.f32.mrf.mxu0
    %v1989 = vadd.f32 0.0, %v1988
    %1990 = vmatprep.mubr.f32.mxu0 0.0
    %1991 = vmatmul.mubr.f32.gmra.mxu0 %v1697
    %v1992 = vpop.f32.mrf.mxu0
    %v1993 = vadd.f32 0.0, %v1992
    %v1994 = vpop.f32.mrf.mxu0
    %v1995 = vadd.f32 0.0, %v1994
    %1996 = vmatprep.mubr.f32.mxu0 0.0
    %1997 = vmatmul.mubr.f32.gmra.mxu0 %v1700
    %v1998 = vpop.f32.mrf.mxu0
    %v1999 = vadd.f32 0.0, %v1998
    %v2000 = vpop.f32.mrf.mxu0
    %v2001 = vadd.f32 0.0, %v2000
    %2002 = vmatprep.mubr.f32.mxu0 0.0
    %2003 = vmatmul.mubr.f32.gmra.mxu0 %v1703
    %v2004 = vpop.f32.mrf.mxu0
    %v2005 = vadd.f32 0.0, %v2004
    %v2006 = vpop.f32.mrf.mxu0
    %v2007 = vadd.f32 0.0, %v2006
    %2008 = vmatprep.mubr.f32.mxu0 0.0
    %2009 = vmatmul.mubr.f32.gmra.mxu0 %v1706
    %v2010 = vpop.f32.mrf.mxu0
    %v2011 = vadd.f32 0.0, %v2010
    %v2012 = vpop.f32.mrf.mxu0
    %v2013 = vadd.f32 0.0, %v2012
    %2014 = vmatprep.mubr.f32.mxu0 0.0
    %2015 = vmatmul.mubr.f32.gmra.mxu0 %v1709
    %v2016 = vpop.f32.mrf.mxu0
    %v2017 = vadd.f32 0.0, %v2016
    %v2018 = vpop.f32.mrf.mxu0
    %v2019 = vadd.f32 0.0, %v2018
    %2020 = vmatprep.mubr.f32.mxu0 0.0
    %2021 = vmatmul.mubr.f32.gmra.mxu0 %v1712
    %v2022 = vpop.f32.mrf.mxu0
    %v2023 = vadd.f32 0.0, %v2022
    %v2024 = vpop.f32.mrf.mxu0
    %v2025 = vadd.f32 0.0, %v2024
    %2026 = vmatprep.mubr.f32.mxu0 0.0
    %2027 = vmatmul.mubr.f32.gmra.mxu0 %v1715
    %v2028 = vpop.f32.mrf.mxu0
    %v2029 = vadd.f32 0.0, %v2028
    %v2030 = vpop.f32.mrf.mxu0
    %v2031 = vadd.f32 0.0, %v2030
    %2032 = vmatprep.mubr.f32.mxu0 0.0
    %2033 = vmatmul.mubr.f32.gmra.mxu0 %v1718
    %v2034 = vpop.f32.mrf.mxu0
    %v2035 = vadd.f32 0.0, %v2034
    %v2036 = vpop.f32.mrf.mxu0
    %v2037 = vadd.f32 0.0, %v2036
    %2038 = vmatprep.mubr.f32.mxu0 0.0
    %2039 = vmatmul.mubr.f32.gmra.mxu0 %v1721
    %v2040 = vpop.f32.mrf.mxu0
    %v2041 = vadd.f32 0.0, %v2040
    %v2042 = vpop.f32.mrf.mxu0
    %v2043 = vadd.f32 0.0, %v2042
    %2044 = vdwg.mxu0
    %v2045 = vadd.s32 %v1146, 128
    %v2046 = vadd.s32 %v1146, 256
    %v2047 = vadd.s32 %v1146, 384
    %v2048 = vshra.s32 %v579, 3
    %v2049 = vshra.s32 %v580, 3
    %v2050 = vshra.s32 %v581, 3
    %v2051 = vshra.s32 %v582, 3
    %v2052 = vshra.s32 %v583, 3
    %v2053 = vshra.s32 %v584, 3
    %v2054 = vshra.s32 %v585, 3
    %v2055 = vshra.s32 %v586, 3
    %v2056 = vshra.s32 %v1146, 5
    %v2057 = vshra.s32 %v2045, 5
    %v2058 = vshra.s32 %v2046, 5
    %v2059 = vshra.s32 %v2047, 5
    %vm2060 = vcmp.eq.s32.totalorder %v1147, %v2056
    %vm2061 = vcmp.eq.s32.totalorder %v1147, %v2057
    %vm2062 = vcmp.eq.s32.totalorder %v1147, %v2058
    %vm2063 = vcmp.eq.s32.totalorder %v1147, %v2059
    %vm2064 = vcmp.eq.s32.totalorder %v1148, %v2056
    %vm2065 = vcmp.eq.s32.totalorder %v1148, %v2057
    %vm2066 = vcmp.eq.s32.totalorder %v1148, %v2058
    %vm2067 = vcmp.eq.s32.totalorder %v1148, %v2059
    %vm2068 = vcmp.eq.s32.totalorder %v1149, %v2056
    %vm2069 = vcmp.eq.s32.totalorder %v1149, %v2057
    %vm2070 = vcmp.eq.s32.totalorder %v1149, %v2058
    %vm2071 = vcmp.eq.s32.totalorder %v1149, %v2059
    %vm2072 = vcmp.eq.s32.totalorder %v1150, %v2056
    %vm2073 = vcmp.eq.s32.totalorder %v1150, %v2057
    %vm2074 = vcmp.eq.s32.totalorder %v1150, %v2058
    %vm2075 = vcmp.eq.s32.totalorder %v1150, %v2059
    %vm2076 = vcmp.eq.s32.totalorder %v1151, %v2056
    %vm2077 = vcmp.eq.s32.totalorder %v1151, %v2057
    %vm2078 = vcmp.eq.s32.totalorder %v1151, %v2058
    %vm2079 = vcmp.eq.s32.totalorder %v1151, %v2059
    %vm2080 = vcmp.eq.s32.totalorder %v1152, %v2056
    %vm2081 = vcmp.eq.s32.totalorder %v1152, %v2057
    %vm2082 = vcmp.eq.s32.totalorder %v1152, %v2058
    %vm2083 = vcmp.eq.s32.totalorder %v1152, %v2059
    %vm2084 = vcmp.eq.s32.totalorder %v1153, %v2056
    %vm2085 = vcmp.eq.s32.totalorder %v1153, %v2057
    %vm2086 = vcmp.eq.s32.totalorder %v1153, %v2058
    %vm2087 = vcmp.eq.s32.totalorder %v1153, %v2059
    %vm2088 = vcmp.eq.s32.totalorder %v1154, %v2056
    %vm2089 = vcmp.eq.s32.totalorder %v1154, %v2057
    %vm2090 = vcmp.eq.s32.totalorder %v1154, %v2058
    %vm2091 = vcmp.eq.s32.totalorder %v1154, %v2059
    %vm2092 = vcmp.eq.s32.totalorder %v2048, %v2056
    %vm2093 = vcmp.eq.s32.totalorder %v2048, %v2057
    %vm2094 = vcmp.eq.s32.totalorder %v2048, %v2058
    %vm2095 = vcmp.eq.s32.totalorder %v2048, %v2059
    %vm2096 = vcmp.eq.s32.totalorder %v2049, %v2056
    %vm2097 = vcmp.eq.s32.totalorder %v2049, %v2057
    %vm2098 = vcmp.eq.s32.totalorder %v2049, %v2058
    %vm2099 = vcmp.eq.s32.totalorder %v2049, %v2059
    %vm2100 = vcmp.eq.s32.totalorder %v2050, %v2056
    %vm2101 = vcmp.eq.s32.totalorder %v2050, %v2057
    %vm2102 = vcmp.eq.s32.totalorder %v2050, %v2058
    %vm2103 = vcmp.eq.s32.totalorder %v2050, %v2059
    %vm2104 = vcmp.eq.s32.totalorder %v2051, %v2056
    %vm2105 = vcmp.eq.s32.totalorder %v2051, %v2057
    %vm2106 = vcmp.eq.s32.totalorder %v2051, %v2058
    %vm2107 = vcmp.eq.s32.totalorder %v2051, %v2059
    %vm2108 = vcmp.eq.s32.totalorder %v2052, %v2056
    %vm2109 = vcmp.eq.s32.totalorder %v2052, %v2057
    %vm2110 = vcmp.eq.s32.totalorder %v2052, %v2058
    %vm2111 = vcmp.eq.s32.totalorder %v2052, %v2059
    %vm2112 = vcmp.eq.s32.totalorder %v2053, %v2056
    %vm2113 = vcmp.eq.s32.totalorder %v2053, %v2057
    %vm2114 = vcmp.eq.s32.totalorder %v2053, %v2058
    %vm2115 = vcmp.eq.s32.totalorder %v2053, %v2059
    %vm2116 = vcmp.eq.s32.totalorder %v2054, %v2056
    %vm2117 = vcmp.eq.s32.totalorder %v2054, %v2057
    %vm2118 = vcmp.eq.s32.totalorder %v2054, %v2058
    %vm2119 = vcmp.eq.s32.totalorder %v2054, %v2059
    %vm2120 = vcmp.eq.s32.totalorder %v2055, %v2056
    %vm2121 = vcmp.eq.s32.totalorder %v2055, %v2057
    %vm2122 = vcmp.eq.s32.totalorder %v2055, %v2058
    %vm2123 = vcmp.eq.s32.totalorder %v2055, %v2059
    %v2124 = vsel %vm2060, 1, 0
    %v2125 = vsel %vm2061, 1, 0
    %v2126 = vsel %vm2062, 1, 0
    %v2127 = vsel %vm2063, 1, 0
    %v2128 = vsel %vm2064, 1, 0
    %v2129 = vsel %vm2065, 1, 0
    %v2130 = vsel %vm2066, 1, 0
    %v2131 = vsel %vm2067, 1, 0
    %v2132 = vsel %vm2068, 1, 0
    %v2133 = vsel %vm2069, 1, 0
    %v2134 = vsel %vm2070, 1, 0
    %v2135 = vsel %vm2071, 1, 0
    %v2136 = vsel %vm2072, 1, 0
    %v2137 = vsel %vm2073, 1, 0
    %v2138 = vsel %vm2074, 1, 0
    %v2139 = vsel %vm2075, 1, 0
    %v2140 = vsel %vm2076, 1, 0
    %v2141 = vsel %vm2077, 1, 0
    %v2142 = vsel %vm2078, 1, 0
    %v2143 = vsel %vm2079, 1, 0
    %v2144 = vsel %vm2080, 1, 0
    %v2145 = vsel %vm2081, 1, 0
    %v2146 = vsel %vm2082, 1, 0
    %v2147 = vsel %vm2083, 1, 0
    %v2148 = vsel %vm2084, 1, 0
    %v2149 = vsel %vm2085, 1, 0
    %v2150 = vsel %vm2086, 1, 0
    %v2151 = vsel %vm2087, 1, 0
    %v2152 = vsel %vm2088, 1, 0
    %v2153 = vsel %vm2089, 1, 0
    %v2154 = vsel %vm2090, 1, 0
    %v2155 = vsel %vm2091, 1, 0
    %v2156 = vsel %vm2092, 1, 0
    %v2157 = vsel %vm2093, 1, 0
    %v2158 = vsel %vm2094, 1, 0
    %v2159 = vsel %vm2095, 1, 0
    %v2160 = vsel %vm2096, 1, 0
    %v2161 = vsel %vm2097, 1, 0
    %v2162 = vsel %vm2098, 1, 0
    %v2163 = vsel %vm2099, 1, 0
    %v2164 = vsel %vm2100, 1, 0
    %v2165 = vsel %vm2101, 1, 0
    %v2166 = vsel %vm2102, 1, 0
    %v2167 = vsel %vm2103, 1, 0
    %v2168 = vsel %vm2104, 1, 0
    %v2169 = vsel %vm2105, 1, 0
    %v2170 = vsel %vm2106, 1, 0
    %v2171 = vsel %vm2107, 1, 0
    %v2172 = vsel %vm2108, 1, 0
    %v2173 = vsel %vm2109, 1, 0
    %v2174 = vsel %vm2110, 1, 0
    %v2175 = vsel %vm2111, 1, 0
    %v2176 = vsel %vm2112, 1, 0
    %v2177 = vsel %vm2113, 1, 0
    %v2178 = vsel %vm2114, 1, 0
    %v2179 = vsel %vm2115, 1, 0
    %v2180 = vsel %vm2116, 1, 0
    %v2181 = vsel %vm2117, 1, 0
    %v2182 = vsel %vm2118, 1, 0
    %v2183 = vsel %vm2119, 1, 0
    %v2184 = vsel %vm2120, 1, 0
    %v2185 = vsel %vm2121, 1, 0
    %v2186 = vsel %vm2122, 1, 0
    %v2187 = vsel %vm2123, 1, 0
    %v2188 = vcvt.s32.f32 %v2124
    %v2189 = vcvt.s32.f32 %v2125
    %v2190 = vcvt.s32.f32 %v2126
    %v2191 = vcvt.s32.f32 %v2127
    %v2192 = vcvt.s32.f32 %v2128
    %v2193 = vcvt.s32.f32 %v2129
    %v2194 = vcvt.s32.f32 %v2130
    %v2195 = vcvt.s32.f32 %v2131
    %v2196 = vcvt.s32.f32 %v2132
    %v2197 = vcvt.s32.f32 %v2133
    %v2198 = vcvt.s32.f32 %v2134
    %v2199 = vcvt.s32.f32 %v2135
    %v2200 = vcvt.s32.f32 %v2136
    %v2201 = vcvt.s32.f32 %v2137
    %v2202 = vcvt.s32.f32 %v2138
    %v2203 = vcvt.s32.f32 %v2139
    %v2204 = vcvt.s32.f32 %v2140
    %v2205 = vcvt.s32.f32 %v2141
    %v2206 = vcvt.s32.f32 %v2142
    %v2207 = vcvt.s32.f32 %v2143
    %v2208 = vcvt.s32.f32 %v2144
    %v2209 = vcvt.s32.f32 %v2145
    %v2210 = vcvt.s32.f32 %v2146
    %v2211 = vcvt.s32.f32 %v2147
    %v2212 = vcvt.s32.f32 %v2148
    %v2213 = vcvt.s32.f32 %v2149
    %v2214 = vcvt.s32.f32 %v2150
    %v2215 = vcvt.s32.f32 %v2151
    %v2216 = vcvt.s32.f32 %v2152
    %v2217 = vcvt.s32.f32 %v2153
    %v2218 = vcvt.s32.f32 %v2154
    %v2219 = vcvt.s32.f32 %v2155
    %v2220 = vcvt.s32.f32 %v2156
    %v2221 = vcvt.s32.f32 %v2157
    %v2222 = vcvt.s32.f32 %v2158
    %v2223 = vcvt.s32.f32 %v2159
    %v2224 = vcvt.s32.f32 %v2160
    %v2225 = vcvt.s32.f32 %v2161
    %v2226 = vcvt.s32.f32 %v2162
    %v2227 = vcvt.s32.f32 %v2163
    %v2228 = vcvt.s32.f32 %v2164
    %v2229 = vcvt.s32.f32 %v2165
    %v2230 = vcvt.s32.f32 %v2166
    %v2231 = vcvt.s32.f32 %v2167
    %v2232 = vcvt.s32.f32 %v2168
    %v2233 = vcvt.s32.f32 %v2169
    %v2234 = vcvt.s32.f32 %v2170
    %v2235 = vcvt.s32.f32 %v2171
    %v2236 = vcvt.s32.f32 %v2172
    %v2237 = vcvt.s32.f32 %v2173
    %v2238 = vcvt.s32.f32 %v2174
    %v2239 = vcvt.s32.f32 %v2175
    %v2240 = vcvt.s32.f32 %v2176
    %v2241 = vcvt.s32.f32 %v2177
    %v2242 = vcvt.s32.f32 %v2178
    %v2243 = vcvt.s32.f32 %v2179
    %v2244 = vcvt.s32.f32 %v2180
    %v2245 = vcvt.s32.f32 %v2181
    %v2246 = vcvt.s32.f32 %v2182
    %v2247 = vcvt.s32.f32 %v2183
    %v2248 = vcvt.s32.f32 %v2184
    %v2249 = vcvt.s32.f32 %v2185
    %v2250 = vcvt.s32.f32 %v2186
    %v2251 = vcvt.s32.f32 %v2187
    %v2252 = vcvt.f32.s32.to.zero.pseudo %v30
    %v2253 = vlaneseq
    %v2254 = vshrl.u32 %v2253, 7
    %v2255 = vsub.s32 0, %v2254
    %v2256 = vrot.slane %v2252, %v2255
    %v2257 = vlaneseq
    %v2258 = vshrl.u32 %v2257, 7
    %v2259 = vsub.s32 1, %v2258
    %v2260 = vrot.slane %v2252, %v2259
    %v2261 = vlaneseq
    %v2262 = vshrl.u32 %v2261, 7
    %v2263 = vsub.s32 2, %v2262
    %v2264 = vrot.slane %v2252, %v2263
    %v2265 = vlaneseq
    %v2266 = vshrl.u32 %v2265, 7
    %v2267 = vsub.s32 3, %v2266
    %v2268 = vrot.slane %v2252, %v2267
    %vm2269 = vcmp.eq.s32.totalorder %v2256, %v571
    %vm2270 = vcmp.eq.s32.totalorder %v2260, %v571
    %vm2271 = vcmp.eq.s32.totalorder %v2264, %v571
    %vm2272 = vcmp.eq.s32.totalorder %v2268, %v571
    %vm2273 = vcmp.eq.s32.totalorder %v2256, %v572
    %vm2274 = vcmp.eq.s32.totalorder %v2260, %v572
    %vm2275 = vcmp.eq.s32.totalorder %v2264, %v572
    %vm2276 = vcmp.eq.s32.totalorder %v2268, %v572
    %v2277 = vsel %vm2269, 1, 0
    %v2278 = vsel %vm2270, 1, 0
    %v2279 = vsel %vm2271, 1, 0
    %v2280 = vsel %vm2272, 1, 0
    %v2281 = vsel %vm2273, 1, 0
    %v2282 = vsel %vm2274, 1, 0
    %v2283 = vsel %vm2275, 1, 0
    %v2284 = vsel %vm2276, 1, 0
    %v2285 = vcvt.s32.f32 %v2277
    %v2286 = vcvt.s32.f32 %v2278
    %v2287 = vcvt.s32.f32 %v2279
    %v2288 = vcvt.s32.f32 %v2280
    %v2289 = vcvt.s32.f32 %v2281
    %v2290 = vcvt.s32.f32 %v2282
    %v2291 = vcvt.s32.f32 %v2283
    %v2292 = vcvt.s32.f32 %v2284
    %v2293 = vmul.f32 %v1790, %v2188
    %v2294 = vmul.f32 %v1792, %v2189
    %v2295 = vmul.f32 %v1951, %v2190
    %v2296 = vmul.f32 %v1953, %v2191
    %v2297 = vmul.f32 %v1796, %v2192
    %v2298 = vmul.f32 %v1798, %v2193
    %v2299 = vmul.f32 %v1957, %v2194
    %v2300 = vmul.f32 %v1959, %v2195
    %v2301 = vmul.f32 %v1802, %v2196
    %v2302 = vmul.f32 %v1804, %v2197
    %v2303 = vmul.f32 %v1963, %v2198
    %v2304 = vmul.f32 %v1965, %v2199
    %v2305 = vmul.f32 %v1808, %v2200
    %v2306 = vmul.f32 %v1810, %v2201
    %v2307 = vmul.f32 %v1969, %v2202
    %v2308 = vmul.f32 %v1971, %v2203
    %v2309 = vmul.f32 %v1814, %v2204
    %v2310 = vmul.f32 %v1816, %v2205
    %v2311 = vmul.f32 %v1975, %v2206
    %v2312 = vmul.f32 %v1977, %v2207
    %v2313 = vmul.f32 %v1820, %v2208
    %v2314 = vmul.f32 %v1822, %v2209
    %v2315 = vmul.f32 %v1981, %v2210
    %v2316 = vmul.f32 %v1983, %v2211
    %v2317 = vmul.f32 %v1826, %v2212
    %v2318 = vmul.f32 %v1828, %v2213
    %v2319 = vmul.f32 %v1987, %v2214
    %v2320 = vmul.f32 %v1989, %v2215
    %v2321 = vmul.f32 %v1832, %v2216
    %v2322 = vmul.f32 %v1834, %v2217
    %v2323 = vmul.f32 %v1993, %v2218
    %v2324 = vmul.f32 %v1995, %v2219
    %v2325 = vmul.f32 %v1838, %v2220
    %v2326 = vmul.f32 %v1840, %v2221
    %v2327 = vmul.f32 %v1999, %v2222
    %v2328 = vmul.f32 %v2001, %v2223
    %v2329 = vmul.f32 %v1844, %v2224
    %v2330 = vmul.f32 %v1846, %v2225
    %v2331 = vmul.f32 %v2005, %v2226
    %v2332 = vmul.f32 %v2007, %v2227
    %v2333 = vmul.f32 %v1850, %v2228
    %v2334 = vmul.f32 %v1852, %v2229
    %v2335 = vmul.f32 %v2011, %v2230
    %v2336 = vmul.f32 %v2013, %v2231
    %v2337 = vmul.f32 %v1856, %v2232
    %v2338 = vmul.f32 %v1858, %v2233
    %v2339 = vmul.f32 %v2017, %v2234
    %v2340 = vmul.f32 %v2019, %v2235
    %v2341 = vmul.f32 %v1862, %v2236
    %v2342 = vmul.f32 %v1864, %v2237
    %v2343 = vmul.f32 %v2023, %v2238
    %v2344 = vmul.f32 %v2025, %v2239
    %v2345 = vmul.f32 %v1868, %v2240
    %v2346 = vmul.f32 %v1870, %v2241
    %v2347 = vmul.f32 %v2029, %v2242
    %v2348 = vmul.f32 %v2031, %v2243
    %v2349 = vmul.f32 %v1874, %v2244
    %v2350 = vmul.f32 %v1876, %v2245
    %v2351 = vmul.f32 %v2035, %v2246
    %v2352 = vmul.f32 %v2037, %v2247
    %v2353 = vmul.f32 %v1880, %v2248
    %v2354 = vmul.f32 %v1882, %v2249
    %v2355 = vmul.f32 %v2041, %v2250
    %v2356 = vmul.f32 %v2043, %v2251
    %2357 = vmatprep.subr.mxu0 %v2354
    %2358 = vmatpush1.xpose.msra.mxu0 %v2353
    %2359 = vmatprep.subr.mxu0 %v2350
    %2360 = vmatpush1.xpose.msra.mxu0 %v2349
    %2361 = vmatprep.subr.mxu0 %v2346
    %2362 = vmatpush1.xpose.msra.mxu0 %v2345
    %2363 = vmatprep.subr.mxu0 %v2342
    %2364 = vmatpush1.xpose.msra.mxu0 %v2341
    %2365 = vmatprep.subr.mxu0 %v2338
    %2366 = vmatpush1.xpose.msra.mxu0 %v2337
    %2367 = vmatprep.subr.mxu0 %v2334
    %2368 = vmatpush1.xpose.msra.mxu0 %v2333
    %2369 = vmatprep.subr.mxu0 %v2330
    %2370 = vmatpush1.xpose.msra.mxu0 %v2329
    %2371 = vmatprep.subr.mxu0 %v2326
    %2372 = vmatpush1.xpose.msra.mxu0 %v2325
    %2373 = vmatprep.subr.mxu0 %v2322
    %2374 = vmatpush1.xpose.msra.mxu0 %v2321
    %2375 = vmatprep.subr.mxu0 %v2318
    %2376 = vmatpush1.xpose.msra.mxu0 %v2317
    %2377 = vmatprep.subr.mxu0 %v2314
    %2378 = vmatpush1.xpose.msra.mxu0 %v2313
    %2379 = vmatprep.subr.mxu0 %v2310
    %2380 = vmatpush1.xpose.msra.mxu0 %v2309
    %2381 = vmatprep.subr.mxu0 %v2306
    %2382 = vmatpush1.xpose.msra.mxu0 %v2305
    %2383 = vmatprep.subr.mxu0 %v2302
    %2384 = vmatpush1.xpose.msra.mxu0 %v2301
    %2385 = vmatprep.subr.mxu0 %v2298
    %2386 = vmatpush1.xpose.msra.mxu0 %v2297
    %2387 = vmatprep.subr.mxu0 %v2294
    %2388 = vmatpush1.xpose.msra.mxu0 %v2293
    %2389 = vmatprep.subr.mxu0 0.0
    %2390 = vmatpush2.xpose.msra.mxu0 0.0
    %2391 = vmatprep.subr.mxu0 0.0
    %2392 = vmatpush2.xpose.msra.mxu0 0.0
    %2393 = vmatprep.subr.mxu0 0.0
    %2394 = vmatpush2.xpose.msra.mxu0 0.0
    %2395 = vmatprep.subr.mxu0 0.0
    %2396 = vmatpush2.xpose.msra.mxu0 0.0
    %2397 = vmatprep.subr.mxu0 0.0
    %2398 = vmatpush2.xpose.msra.mxu0 0.0
    %2399 = vmatprep.subr.mxu0 0.0
    %2400 = vmatpush2.xpose.msra.mxu0 0.0
    %2401 = vmatprep.subr.mxu0 0.0
    %2402 = vmatpush2.xpose.msra.mxu0 0.0
    %2403 = vmatprep.subr.mxu0 0.0
    %2404 = vmatpush2.xpose.msra.mxu0 0.0
    %2405 = vmatprep.subr.mxu0 0.0
    %2406 = vmatpush2.xpose.msra.mxu0 0.0
    %2407 = vmatprep.subr.mxu0 0.0
    %2408 = vmatpush2.xpose.msra.mxu0 0.0
    %2409 = vmatprep.subr.mxu0 0.0
    %2410 = vmatpush2.xpose.msra.mxu0 0.0
    %2411 = vmatprep.subr.mxu0 0.0
    %2412 = vmatpush2.xpose.msra.mxu0 0.0
    %2413 = vmatprep.subr.mxu0 0.0
    %2414 = vmatpush2.xpose.msra.mxu0 0.0
    %2415 = vmatprep.subr.mxu0 0.0
    %2416 = vmatpush2.xpose.msra.mxu0 0.0
    %2417 = vmatprep.subr.mxu0 0.0
    %2418 = vmatpush2.xpose.msra.mxu0 0.0
    %2419 = vmatprep.subr.mxu0 0.0
    %2420 = vmatpush2.xpose.msra.mxu0 0.0
    %2421 = vmatprep.mubr.f32.mxu0 %v2286
    %2422 = vmatmul.mubr.f32.gmra.mxu0 %v2285
    %v2423 = vpop.f32.mrf.mxu0
    %v2424 = vadd.f32 0.0, %v2423
    %v2425 = vpop.f32.mrf.mxu0
    %2426 = vmatprep.mubr.f32.mxu0 %v2290
    %2427 = vmatmul.mubr.f32.gmra.mxu0 %v2289
    %v2428 = vpop.f32.mrf.mxu0
    %v2429 = vadd.f32 0.0, %v2428
    %v2430 = vpop.f32.mrf.mxu0
    %2431 = vdwg.mxu0
    %2432 = vmatprep.subr.mxu0 %v2356
    %2433 = vmatpush1.xpose.msra.mxu0 %v2355
    %2434 = vmatprep.subr.mxu0 %v2352
    %2435 = vmatpush1.xpose.msra.mxu0 %v2351
    %2436 = vmatprep.subr.mxu0 %v2348
    %2437 = vmatpush1.xpose.msra.mxu0 %v2347
    %2438 = vmatprep.subr.mxu0 %v2344
    %2439 = vmatpush1.xpose.msra.mxu0 %v2343
    %2440 = vmatprep.subr.mxu0 %v2340
    %2441 = vmatpush1.xpose.msra.mxu0 %v2339
    %2442 = vmatprep.subr.mxu0 %v2336
    %2443 = vmatpush1.xpose.msra.mxu0 %v2335
    %2444 = vmatprep.subr.mxu0 %v2332
    %2445 = vmatpush1.xpose.msra.mxu0 %v2331
    %2446 = vmatprep.subr.mxu0 %v2328
    %2447 = vmatpush1.xpose.msra.mxu0 %v2327
    %2448 = vmatprep.subr.mxu0 %v2324
    %2449 = vmatpush1.xpose.msra.mxu0 %v2323
    %2450 = vmatprep.subr.mxu0 %v2320
    %2451 = vmatpush1.xpose.msra.mxu0 %v2319
    %2452 = vmatprep.subr.mxu0 %v2316
    %2453 = vmatpush1.xpose.msra.mxu0 %v2315
    %2454 = vmatprep.subr.mxu0 %v2312
    %2455 = vmatpush1.xpose.msra.mxu0 %v2311
    %2456 = vmatprep.subr.mxu0 %v2308
    %2457 = vmatpush1.xpose.msra.mxu0 %v2307
    %2458 = vmatprep.subr.mxu0 %v2304
    %2459 = vmatpush1.xpose.msra.mxu0 %v2303
    %2460 = vmatprep.subr.mxu0 %v2300
    %2461 = vmatpush1.xpose.msra.mxu0 %v2299
    %2462 = vmatprep.subr.mxu0 %v2296
    %2463 = vmatpush1.xpose.msra.mxu0 %v2295
    %2464 = vmatprep.subr.mxu0 0.0
    %2465 = vmatpush2.xpose.msra.mxu0 0.0
    %2466 = vmatprep.subr.mxu0 0.0
    %2467 = vmatpush2.xpose.msra.mxu0 0.0
    %2468 = vmatprep.subr.mxu0 0.0
    %2469 = vmatpush2.xpose.msra.mxu0 0.0
    %2470 = vmatprep.subr.mxu0 0.0
    %2471 = vmatpush2.xpose.msra.mxu0 0.0
    %2472 = vmatprep.subr.mxu0 0.0
    %2473 = vmatpush2.xpose.msra.mxu0 0.0
    %2474 = vmatprep.subr.mxu0 0.0
    %2475 = vmatpush2.xpose.msra.mxu0 0.0
    %2476 = vmatprep.subr.mxu0 0.0
    %2477 = vmatpush2.xpose.msra.mxu0 0.0
    %2478 = vmatprep.subr.mxu0 0.0
    %2479 = vmatpush2.xpose.msra.mxu0 0.0
    %2480 = vmatprep.subr.mxu0 0.0
    %2481 = vmatpush2.xpose.msra.mxu0 0.0
    %2482 = vmatprep.subr.mxu0 0.0
    %2483 = vmatpush2.xpose.msra.mxu0 0.0
    %2484 = vmatprep.subr.mxu0 0.0
    %2485 = vmatpush2.xpose.msra.mxu0 0.0
    %2486 = vmatprep.subr.mxu0 0.0
    %2487 = vmatpush2.xpose.msra.mxu0 0.0
    %2488 = vmatprep.subr.mxu0 0.0
    %2489 = vmatpush2.xpose.msra.mxu0 0.0
    %2490 = vmatprep.subr.mxu0 0.0
    %2491 = vmatpush2.xpose.msra.mxu0 0.0
    %2492 = vmatprep.subr.mxu0 0.0
    %2493 = vmatpush2.xpose.msra.mxu0 0.0
    %2494 = vmatprep.subr.mxu0 0.0
    %2495 = vmatpush2.xpose.msra.mxu0 0.0
    %2496 = vmatprep.mubr.f32.mxu0 %v2288
    %2497 = vmatmul.mubr.f32.gmra.mxu0 %v2287
    %v2498 = vpop.f32.mrf.mxu0
    %v2499 = vadd.f32 %v2424, %v2498
    %v2500 = vpop.f32.mrf.mxu0
    %2501 = vmatprep.mubr.f32.mxu0 %v2292
    %2502 = vmatmul.mubr.f32.gmra.mxu0 %v2291
    %v2503 = vpop.f32.mrf.mxu0
    %v2504 = vadd.f32 %v2429, %v2503
    %v2505 = vpop.f32.mrf.mxu0
    %2506 = vdwg.mxu0
    %2507 = vmatprep.subr.mxu0 %v2249
    %2508 = vmatpush1.xpose.msra.mxu0 %v2248
    %2509 = vmatprep.subr.mxu0 %v2245
    %2510 = vmatpush1.xpose.msra.mxu0 %v2244
    %2511 = vmatprep.subr.mxu0 %v2241
    %2512 = vmatpush1.xpose.msra.mxu0 %v2240
    %2513 = vmatprep.subr.mxu0 %v2237
    %2514 = vmatpush1.xpose.msra.mxu0 %v2236
    %2515 = vmatprep.subr.mxu0 %v2233
    %2516 = vmatpush1.xpose.msra.mxu0 %v2232
    %2517 = vmatprep.subr.mxu0 %v2229
    %2518 = vmatpush1.xpose.msra.mxu0 %v2228
    %2519 = vmatprep.subr.mxu0 %v2225
    %2520 = vmatpush1.xpose.msra.mxu0 %v2224
    %2521 = vmatprep.subr.mxu0 %v2221
    %2522 = vmatpush1.xpose.msra.mxu0 %v2220
    %2523 = vmatprep.subr.mxu0 %v2217
    %2524 = vmatpush1.xpose.msra.mxu0 %v2216
    %2525 = vmatprep.subr.mxu0 %v2213
    %2526 = vmatpush1.xpose.msra.mxu0 %v2212
    %2527 = vmatprep.subr.mxu0 %v2209
    %2528 = vmatpush1.xpose.msra.mxu0 %v2208
    %2529 = vmatprep.subr.mxu0 %v2205
    %2530 = vmatpush1.xpose.msra.mxu0 %v2204
    %2531 = vmatprep.subr.mxu0 %v2201
    %2532 = vmatpush1.xpose.msra.mxu0 %v2200
    %2533 = vmatprep.subr.mxu0 %v2197
    %2534 = vmatpush1.xpose.msra.mxu0 %v2196
    %2535 = vmatprep.subr.mxu0 %v2193
    %2536 = vmatpush1.xpose.msra.mxu0 %v2192
    %2537 = vmatprep.subr.mxu0 %v2189
    %2538 = vmatpush1.xpose.msra.mxu0 %v2188
    %2539 = vmatprep.subr.mxu0 0.0
    %2540 = vmatpush2.xpose.msra.mxu0 0.0
    %2541 = vmatprep.subr.mxu0 0.0
    %2542 = vmatpush2.xpose.msra.mxu0 0.0
    %2543 = vmatprep.subr.mxu0 0.0
    %2544 = vmatpush2.xpose.msra.mxu0 0.0
    %2545 = vmatprep.subr.mxu0 0.0
    %2546 = vmatpush2.xpose.msra.mxu0 0.0
    %2547 = vmatprep.subr.mxu0 0.0
    %2548 = vmatpush2.xpose.msra.mxu0 0.0
    %2549 = vmatprep.subr.mxu0 0.0
    %2550 = vmatpush2.xpose.msra.mxu0 0.0
    %2551 = vmatprep.subr.mxu0 0.0
    %2552 = vmatpush2.xpose.msra.mxu0 0.0
    %2553 = vmatprep.subr.mxu0 0.0
    %2554 = vmatpush2.xpose.msra.mxu0 0.0
    %2555 = vmatprep.subr.mxu0 0.0
    %2556 = vmatpush2.xpose.msra.mxu0 0.0
    %2557 = vmatprep.subr.mxu0 0.0
    %2558 = vmatpush2.xpose.msra.mxu0 0.0
    %2559 = vmatprep.subr.mxu0 0.0
    %2560 = vmatpush2.xpose.msra.mxu0 0.0
    %2561 = vmatprep.subr.mxu0 0.0
    %2562 = vmatpush2.xpose.msra.mxu0 0.0
    %2563 = vmatprep.subr.mxu0 0.0
    %2564 = vmatpush2.xpose.msra.mxu0 0.0
    %2565 = vmatprep.subr.mxu0 0.0
    %2566 = vmatpush2.xpose.msra.mxu0 0.0
    %2567 = vmatprep.subr.mxu0 0.0
    %2568 = vmatpush2.xpose.msra.mxu0 0.0
    %2569 = vmatprep.subr.mxu0 0.0
    %2570 = vmatpush2.xpose.msra.mxu0 0.0
    %2571 = vmatprep.mubr.f32.mxu0 %v2286
    %2572 = vmatmul.mubr.f32.gmra.mxu0 %v2285
    %v2573 = vpop.f32.mrf.mxu0
    %v2574 = vadd.f32 0.0, %v2573
    %v2575 = vpop.f32.mrf.mxu0
    %2576 = vmatprep.mubr.f32.mxu0 %v2290
    %2577 = vmatmul.mubr.f32.gmra.mxu0 %v2289
    %v2578 = vpop.f32.mrf.mxu0
    %v2579 = vadd.f32 0.0, %v2578
    %v2580 = vpop.f32.mrf.mxu0
    %2581 = vdwg.mxu0
    %2582 = vmatprep.subr.mxu0 %v2251
    %2583 = vmatpush1.xpose.msra.mxu0 %v2250
    %2584 = vmatprep.subr.mxu0 %v2247
    %2585 = vmatpush1.xpose.msra.mxu0 %v2246
    %2586 = vmatprep.subr.mxu0 %v2243
    %2587 = vmatpush1.xpose.msra.mxu0 %v2242
    %2588 = vmatprep.subr.mxu0 %v2239
    %2589 = vmatpush1.xpose.msra.mxu0 %v2238
    %2590 = vmatprep.subr.mxu0 %v2235
    %2591 = vmatpush1.xpose.msra.mxu0 %v2234
    %2592 = vmatprep.subr.mxu0 %v2231
    %2593 = vmatpush1.xpose.msra.mxu0 %v2230
    %2594 = vmatprep.subr.mxu0 %v2227
    %2595 = vmatpush1.xpose.msra.mxu0 %v2226
    %2596 = vmatprep.subr.mxu0 %v2223
    %2597 = vmatpush1.xpose.msra.mxu0 %v2222
    %2598 = vmatprep.subr.mxu0 %v2219
    %2599 = vmatpush1.xpose.msra.mxu0 %v2218
    %2600 = vmatprep.subr.mxu0 %v2215
    %2601 = vmatpush1.xpose.msra.mxu0 %v2214
    %2602 = vmatprep.subr.mxu0 %v2211
    %2603 = vmatpush1.xpose.msra.mxu0 %v2210
    %2604 = vmatprep.subr.mxu0 %v2207
    %2605 = vmatpush1.xpose.msra.mxu0 %v2206
    %2606 = vmatprep.subr.mxu0 %v2203
    %2607 = vmatpush1.xpose.msra.mxu0 %v2202
    %2608 = vmatprep.subr.mxu0 %v2199
    %2609 = vmatpush1.xpose.msra.mxu0 %v2198
    %2610 = vmatprep.subr.mxu0 %v2195
    %2611 = vmatpush1.xpose.msra.mxu0 %v2194
    %2612 = vmatprep.subr.mxu0 %v2191
    %2613 = vmatpush1.xpose.msra.mxu0 %v2190
    %2614 = vmatprep.subr.mxu0 0.0
    %2615 = vmatpush2.xpose.msra.mxu0 0.0
    %2616 = vmatprep.subr.mxu0 0.0
    %2617 = vmatpush2.xpose.msra.mxu0 0.0
    %2618 = vmatprep.subr.mxu0 0.0
    %2619 = vmatpush2.xpose.msra.mxu0 0.0
    %2620 = vmatprep.subr.mxu0 0.0
    %2621 = vmatpush2.xpose.msra.mxu0 0.0
    %2622 = vmatprep.subr.mxu0 0.0
    %2623 = vmatpush2.xpose.msra.mxu0 0.0
    %2624 = vmatprep.subr.mxu0 0.0
    %2625 = vmatpush2.xpose.msra.mxu0 0.0
    %2626 = vmatprep.subr.mxu0 0.0
    %2627 = vmatpush2.xpose.msra.mxu0 0.0
    %2628 = vmatprep.subr.mxu0 0.0
    %2629 = vmatpush2.xpose.msra.mxu0 0.0
    %2630 = vmatprep.subr.mxu0 0.0
    %2631 = vmatpush2.xpose.msra.mxu0 0.0
    %2632 = vmatprep.subr.mxu0 0.0
    %2633 = vmatpush2.xpose.msra.mxu0 0.0
    %2634 = vmatprep.subr.mxu0 0.0
    %2635 = vmatpush2.xpose.msra.mxu0 0.0
    %2636 = vmatprep.subr.mxu0 0.0
    %2637 = vmatpush2.xpose.msra.mxu0 0.0
    %2638 = vmatprep.subr.mxu0 0.0
    %2639 = vmatpush2.xpose.msra.mxu0 0.0
    %2640 = vmatprep.subr.mxu0 0.0
    %2641 = vmatpush2.xpose.msra.mxu0 0.0
    %2642 = vmatprep.subr.mxu0 0.0
    %2643 = vmatpush2.xpose.msra.mxu0 0.0
    %2644 = vmatprep.subr.mxu0 0.0
    %2645 = vmatpush2.xpose.msra.mxu0 0.0
    %2646 = vmatprep.mubr.f32.mxu0 %v2288
    %2647 = vmatmul.mubr.f32.gmra.mxu0 %v2287
    %v2648 = vpop.f32.mrf.mxu0
    %v2649 = vadd.f32 %v2574, %v2648
    %v2650 = vpop.f32.mrf.mxu0
    %2651 = vmatprep.mubr.f32.mxu0 %v2292
    %2652 = vmatmul.mubr.f32.gmra.mxu0 %v2291
    %v2653 = vpop.f32.mrf.mxu0
    %v2654 = vadd.f32 %v2579, %v2653
    %v2655 = vpop.f32.mrf.mxu0
    %2656 = vdwg.mxu0
    %v2657 = vmax.f32 %v2649, 1.0
    %v2658 = vmax.f32 %v2654, 1.0
    %v2659 = vrcp.pop %v2657
    %v2660 = vrcp.pop %v2658
    %v2661 = vmul.f32 %v2499, %v2659
    %v2662 = vmul.f32 %v2504, %v2660
    %v2663 = vadd.f32 %v2661, %v31
    %v2664 = vadd.f32 %v2662, %v31
    %v2665 = vmax.f32 %v2663, 0.0
    %v2666 = vmax.f32 %v2664, 0.0
    %2667 = vst [vmem:[#allocation5] sm:$0xff] %v2665
    %2668 = vst [vmem:[#allocation5 + $0x8] sm:$0xff] %v2666
    // Predicated region
    $region10: #{tpu_custom_call.1} parent=1 // pred_check
      _
    $region11: #{tpu_custom_call.1} parent=1 // pred_check_branch
      %2670 = sbr.rel (0) target = $region13
    $region12: #{tpu_custom_call.1} parent=1 // pred_region
      %s2672 = ssub.s32 256, 256
      %2673 = vsyncadd [#allocation4], %s2672
      %s2674 = sshll.u32 [#allocation5], 4
      %s2675 = int_to_ptr.vmem [resolvable:$true] %s2674
      %2680 = dma.vmem_to_hbm [thread:$0]  %s2675, 256, %s1, [#allocation4], 128, 128, 8
    $region13: #{tpu_custom_call.1} parent=1 // pred_fallthru
      _
    // Predicated region
    $region14: #{tpu_custom_call.1} parent=1 // pred_check
      _
    $region15: #{tpu_custom_call.1} parent=1 // pred_check_branch
      %2682 = sbr.rel (0) target = $region17
    $region16: #{tpu_custom_call.1} parent=1 // pred_region
      %2683 = dma.done [#allocation4], 256
    $region17: #{tpu_custom_call.1} parent=1 // pred_fallthru
      _
    %2684 = vsyncpa [#allocation3], 1
    %2685 = vsyncpa [#allocation4], 1

</llo_original>
